<compile_context>
chip_gen: v5e
topology: v5e:2x2
jax: 0.10.0
libtpu: 0.0.40
codegen_flags: <defaults>
</compile_context>

<pallas_src>
import functools
import numpy as np
import jax
import jax.numpy as jnp
from jax import lax
from jax.experimental import pallas as pl
from jax.experimental.pallas import tpu as pltpu

# ----------------------- small config (original values in comments) ---------
B = 2          # batch
S = 16         # num_pixels      (196 in original, 14x14 grid)
GRID_W = 4     # spatial width   (14 in original)
D = 64         # embed_dim       (2048)
D_FF = 128     # feed-forward    (4096)
N_HEADS = 4    # heads           (8)
QKV = 16       # QKVdim          (64)
N_LAYERS = 2
EPS = 1e-5

# Switch activations/weights to bf16 at production sizes (full-rate MXU, half
# the HBM/VMEM traffic); kernels keep the f32 accumulator + f32 LN/softmax
# epilogues either way.  f32 here so the toy-size check is tight.
COMPUTE_DTYPE = jnp.float32


# -------------------- generation-aware VMEM / tile budgets -------------------
def _query_vmem_capacity():
    try:
        return int(pltpu.get_tpu_info().vmem_capacity_bytes)
    except Exception:
        return None


_VMEM_CAP = _query_vmem_capacity()
# ~3/4 of physical VMEM as the scoped limit (headroom for double buffers /
# compiler scratch); None -> keep the backend default.
_VMEM_LIMIT = int(_VMEM_CAP * 3 // 4) if _VMEM_CAP else None
# 128-MiB VMEM parts (v5e/v6e) can afford 512-row tiles; v7x (64 MiB) -> 256.
_TM_TARGET = 512 if (_VMEM_CAP or 0) >= (100 << 20) else 256


def _compiler_params(dims):
    kw = dict(dimension_semantics=dims)
    if _VMEM_LIMIT is not None:
        kw["vmem_limit_bytes"] = _VMEM_LIMIT
    return pltpu.CompilerParams(**kw)


def _round_up(x, m):
    return ((x + m - 1) // m) * m


def _pick_tm(m):
    """Row tile: multiple of 8, capped by a generation-aware target.  M is
    padded up to a multiple of the tile (no exact-divisor requirement), so at
    prod M=B*196 -> tm=256 and >=2 'parallel' row steps for the megacore."""
    return min(_TM_TARGET, _round_up(min(m, _TM_TARGET), 8))


def _pick_tk(k):
    """Contraction tile: 128-aligned, <=512, keeping the K loop deep enough to
    pipeline weight DMA and blocks at a few MiB (never 32-MiB whole-K)."""
    if k <= 512:
        return k
    for t in (512, 256, 128):
        if k % t == 0:
            return t
    return k   # odd K: whole-K fallback (correct, just bigger blocks)


def _pick_tn(n, layernorm):
    """Output-column tile.  N stays whole only when the fused LayerNorm row
    reduction needs it; otherwise tile (QKV N=1536, FFN1 N=4096 at prod)."""
    if layernorm or n <= 512:
        return n
    for t in (512, 256, 128):
        if n % t == 0:
            return t
    return n


# ----------------------------- Pallas kernels --------------------------------
def _fused_linear_kernel(*refs, relu, layernorm, has_residual):
    """acc += x @ w over the K grid axis; bias/ReLU/residual/LN epilogue."""
    if has_residual:
        x_ref, w_ref, b_ref, res_ref, o_ref, acc_ref = refs
    else:
        x_ref, w_ref, b_ref, o_ref, acc_ref = refs
        res_ref = None

    k = pl.program_id(2)

    @pl.when(k == 0)
    def _():
        acc_ref[...] = jnp.zeros_like(acc_ref)

    acc_ref[...] += jnp.dot(x_ref[...], w_ref[...],
                            preferred_element_type=jnp.float32)

    @pl.when(k == pl.num_programs(2) - 1)
    def _():
        y = acc_ref[...] + b_ref[...].astype(jnp.float32)
        if relu:
            y = jnp.maximum(y, 0.0)
        # dropout(p=0.1) -> identity (eval semantics)
        if has_residual:
            y = y + res_ref[...].astype(jnp.float32)
        if layernorm:
            mu = jnp.mean(y, axis=-1, keepdims=True)
            var = jnp.mean((y - mu) ** 2, axis=-1, keepdims=True)
            y = (y - mu) * jax.lax.rsqrt(var + EPS)
        o_ref[...] = y.astype(o_ref.dtype)


def fused_linear(x, w, b, *, relu=False, residual=None, layernorm=False):
    """y = epilogue(x @ w + b); epilogue = [ReLU] -> [+residual] -> [LayerNorm].

    Grid = (M tiles, N tiles, K tiles); reduction axis K is last/'arbitrary',
    M and N are 'parallel'.  f32 VMEM accumulator.  M is zero-padded to a tile
    multiple and pad rows sliced off afterwards; N kept whole only for the
    LayerNorm row reduction.
    """
    M, K = x.shape
    N = w.shape[1]
    has_residual = residual is not None

    tm, tk, tn = _pick_tm(M), _pick_tk(K), _pick_tn(N, layernorm)
    Mp = _round_up(M, tm)
    if Mp != M:
        x = jnp.pad(x, ((0, Mp - M), (0, 0)))
        if has_residual:
            residual = jnp.pad(residual, ((0, Mp - M), (0, 0)))

    in_specs = [
        pl.BlockSpec((tm, tk), lambda i, j, k: (i, k)),
        pl.BlockSpec((tk, tn), lambda i, j, k: (k, j)),
        pl.BlockSpec((1, tn), lambda i, j, k: (0, j)),
    ]
    args = [x, w, b.reshape(1, N)]
    if has_residual:
        in_specs.append(pl.BlockSpec((tm, tn), lambda i, j, k: (i, j)))
        args.append(residual)
    # NOTE: bias/residual block indices are constant across the K loop so they
    # are never re-DMA'd; single-buffering them (pipeline_mode=pl.Buffered(1))
    # would save a bit more VMEM but is left at the default for portability.

    itm = jnp.dtype(x.dtype).itemsize
    cost = pl.CostEstimate(
        flops=int(2 * Mp * K * N),
        transcendentals=0,
        bytes_accessed=int(itm * (Mp * K + K * N + N
                                  + Mp * N * (2 if has_residual else 1))),
    )

    kernel = functools.partial(_fused_linear_kernel, relu=relu,
                               layernorm=layernorm, has_residual=has_residual)
    out = pl.pallas_call(
        kernel,
        out_shape=jax.ShapeDtypeStruct((Mp, N), x.dtype),
        grid_spec=pltpu.PrefetchScalarGridSpec(
            num_scalar_prefetch=0,
            grid=(Mp // tm, N // tn, K // tk),
            in_specs=in_specs,
            out_specs=pl.BlockSpec((tm, tn), lambda i, j, k: (i, j)),
            scratch_shapes=[pltpu.VMEM((tm, tn), jnp.float32)],
        ),
        compiler_params=_compiler_params(("parallel", "parallel", "arbitrary")),
        cost_estimate=cost,
    )(*args)
    return out[:M] if Mp != M else out


def _attn_kernel(*refs, scale, store_attn):
    """One (batch, head) pair per grid step; q/k/v refs are [S, dk]."""
    if store_attn:
        q_ref, k_ref, v_ref, ctx_ref, attn_ref = refs
    else:
        q_ref, k_ref, v_ref, ctx_ref = refs
        attn_ref = None

    q = q_ref[...].astype(jnp.float32)
    k = k_ref[...].astype(jnp.float32)
    v = v_ref[...].astype(jnp.float32)
    # contract the last dims directly (no explicit k.T materialized)
    scores = lax.dot_general(q, k, (((1,), (1,)), ((), ())),
                             preferred_element_type=jnp.float32) * scale
    # Encoder's mask (zeros == ones) is all-False -> no mask bias needed.
    m = jnp.max(scores, axis=-1, keepdims=True)
    e = jnp.exp(scores - m)
    denom = jnp.sum(e, axis=-1, keepdims=True)
    inv = pl.reciprocal(denom, approx=True)     # EUP slot
    inv = inv * (2.0 - denom * inv)             # one Newton step -> ~f32 exact
    p = e * inv
    ctx = jnp.dot(p, v, preferred_element_type=jnp.float32)
    ctx_ref[...] = ctx.astype(ctx_ref.dtype)
    if store_attn:
        attn_ref[...] = p.astype(attn_ref.dtype)


def attention(qkv_h, *, return_attn=True):
    """qkv_h: [B, 3*H, S, dk] heads-major packed q|k|v.

    Grid = (batch, head): per-head BlockSpec DMA keeps exactly one head's
    q/k/v plus a single [S, S] score tile live per step (bounded vreg/VMEM
    pressure) and gives the megacore B*H parallel units.  Context is written
    head-major [B, H, S, dk] (full-block, offset-0 stores) and transposed back
    to [B, S, H*dk] by XLA outside the kernel.
    """
    B_, threeH, S_, dk = qkv_h.shape
    H = threeH // 3
    scale = 1.0 / float(np.sqrt(dk))

    in_specs = [
        pl.BlockSpec((None, None, S_, dk), lambda b, h: (b, h, 0, 0)),
        pl.BlockSpec((None, None, S_, dk), lambda b, h: (b, H + h, 0, 0)),
        pl.BlockSpec((None, None, S_, dk), lambda b, h: (b, 2 * H + h, 0, 0)),
    ]
    out_shape = [jax.ShapeDtypeStruct((B_, H, S_, dk), qkv_h.dtype)]
    out_specs = [pl.BlockSpec((None, None, S_, dk), lambda b, h: (b, h, 0, 0))]
    if return_attn:
        # Diagnostic output the reference module returns; callers that do not
        # consume the attention maps should pass return_attn=False.
        out_shape.append(jax.ShapeDtypeStruct((B_, H, S_, S_), jnp.float32))
        out_specs.append(pl.BlockSpec((None, None, S_, S_),
                                      lambda b, h: (b, h, 0, 0)))

    itm = jnp.dtype(qkv_h.dtype).itemsize
    cost = pl.CostEstimate(
        flops=int(4 * B_ * H * S_ * S_ * dk),
        transcendentals=int(B_ * H * S_ * S_),
        bytes_accessed=int(itm * 4 * B_ * H * S_ * dk
                           + (4 * B_ * H * S_ * S_ if return_attn else 0)),
    )

    kernel = functools.partial(_attn_kernel, scale=scale,
                               store_attn=return_attn)
    outs = pl.pallas_call(
        kernel,
        out_shape=tuple(out_shape),
        grid_spec=pltpu.PrefetchScalarGridSpec(
            num_scalar_prefetch=0,
            grid=(B_, H),
            in_specs=in_specs,
            out_specs=out_specs,
        ),
        compiler_params=_compiler_params(("parallel", "parallel")),
        cost_estimate=cost,
    )(qkv_h, qkv_h, qkv_h)
    ctx_h = outs[0]
    attn = outs[1] if return_attn else None
    return ctx_h, attn


# ----------------------------- model glue (plain JAX) ------------------------
def multi_head_attention(x, p):
    """x: [B, S, D].  Returns (LayerNorm(W_O(ctx) + x), attn [B, H, S, S])."""
    B_, S_, D_ = x.shape
    xf = x.reshape(B_ * S_, D_)
    # fused Q|K|V projection: one matmul instead of three
    qkv = fused_linear(xf, p["w_qkv"], p["b_qkv"])            # [B*S, 3*H*dk]
    # heads-major layout so attention BlockSpecs DMA one lane-aligned head at
    # a time (pure layout op; negligible next to the matmuls)
    qkv_h = qkv.reshape(B_, S_, 3 * N_HEADS, QKV).transpose(0, 2, 1, 3)
    ctx_h, attn = attention(qkv_h, return_attn=True)
    ctx = ctx_h.transpose(0, 2, 1, 3).reshape(B_ * S_, N_HEADS * QKV)
    # W_O projection + dropout(identity) + residual + LayerNorm, all fused
    out = fused_linear(ctx, p["wo"], p["bo"], residual=xf, layernorm=True)
    return out.reshape(B_, S_, D_), attn


def pos_ffn(x, p):
    B_, S_, D_ = x.shape
    xf = x.reshape(B_ * S_, D_)
    h = fused_linear(xf, p["w1"], p["b1"], relu=True)          # conv1(1x1)+ReLU
    o = fused_linear(h, p["w2"], p["b2"],                      # conv2(1x1)
                     residual=xf, layernorm=True)              # +dropout(id)+LN
    return o.reshape(B_, S_, D_)


def get_position_embedding_table(positions=S, d=D, grid_w=GRID_W):
    half = d // 2
    pos = np.arange(positions)
    hid = np.arange(half)
    x = pos % grid_w
    y = pos // grid_w
    denom = np.power(10000.0, hid / float(half))
    x_enc = x[:, None] / denom[None, :]
    y_enc = y[:, None] / denom[None, :]
    table = np.concatenate([np.sin(x_enc), np.sin(y_enc)], axis=1)
    return jnp.asarray(table, jnp.float32)


@jax.jit
def encoder_forward(x, layer_params, pos_table):
    B_, S_, _ = x.shape
    x = x + pos_table[None, :S_, :]
    # Encoder builds mask as zeros == ones -> all False -> no masking; the
    # additive bias is dropped entirely (it would be pure zero traffic).
    attns = []
    for p in layer_params:
        x, attn = multi_head_attention(x, p)
        x = pos_ffn(x, p)
        attns.append(attn)
    return x, attns


# ----------------------------- parameter init --------------------------------
def init_linear(key, fan_in, fan_out):
    k1, k2 = jax.random.split(key)
    bound = 1.0 / np.sqrt(fan_in)
    w = jax.random.uniform(k1, (fan_in, fan_out), jnp.float32, -bound, bound)
    b = jax.random.uniform(k2, (fan_out,), jnp.float32, -bound, bound)
    return w.astype(COMPUTE_DTYPE), b.astype(COMPUTE_DTYPE)


def init_layer_params(key):
    ks = jax.random.split(key, 6)
    wq, bq = init_linear(ks[0], D, N_HEADS * QKV)
    wk, bk = init_linear(ks[1], D, N_HEADS * QKV)
    wv, bv = init_linear(ks[2], D, N_HEADS * QKV)
    wo, bo = init_linear(ks[3], N_HEADS * QKV, D)
    w1, b1 = init_linear(ks[4], D, D_FF)    # conv1 (1x1) weights
    w2, b2 = init_linear(ks[5], D_FF, D)    # conv2 (1x1) weights
    return dict(
        wq=wq, bq=bq, wk=wk, bk=bk, wv=wv, bv=bv, wo=wo, bo=bo,
        w1=w1, b1=b1, w2=w2, b2=b2,
        # fused QKV weights used by the Pallas path
        w_qkv=jnp.concatenate([wq, wk, wv], axis=1),
        b_qkv=jnp.concatenate([bq, bk, bv], axis=0),
    )


# ----------------------------- pure-JAX reference ----------------------------
def ref_forward(x, layer_params, pos_table):
    def ln(y):
        mu = y.mean(-1, keepdims=True)
        var = ((y - mu) ** 2).mean(-1, keepdims=True)
        return (y - mu) / jnp.sqrt(var + EPS)

    x = x + pos_table[None]
    attns = []
    for p in layer_params:
        B_, S_, _ = x.shape
        q = x @ p["wq"] + p["bq"]
        k = x @ p["wk"] + p["bk"]
        v = x @ p["wv"] + p["bv"]

        def sp(t):
            return t.reshape(B_, S_, N_HEADS, QKV).transpose(0, 2, 1, 3)

        qh, kh, vh = sp(q), sp(k), sp(v)
        scores = jnp.einsum('bhqd,bhkd->bhqk', qh, kh) / np.sqrt(QKV)
        attn = jax.nn.softmax(scores, axis=-1)
        ctx = jnp.einsum('bhqk,bhkd->bhqd', attn, vh)
        ctx = ctx.transpose(0, 2, 1, 3).reshape(B_, S_, N_HEADS * QKV)
        out = ctx @ p["wo"] + p["bo"]
        x1 = ln(out + x)
        h = jax.nn.relu(x1 @ p["w1"] + p["b1"])
        o = h @ p["w2"] + p["b2"]
        x = ln(o + x1)
        attns.append(attn)
    return x, attns


# ----------------------------------- main -------------------------------------
if __name__ == "__main__":
    key = jax.random.PRNGKey(0)
    k_x, *k_layers = jax.random.split(key, N_LAYERS + 1)

    x = jax.random.normal(k_x, (B, S, D), jnp.float32).astype(COMPUTE_DTYPE)
    layer_params = [init_layer_params(k) for k in k_layers]
    pos_table = get_position_embedding_table()

    out, attns = encoder_forward(x, layer_params, pos_table)
    out = jax.block_until_ready(out)
    attns = [jax.block_until_ready(a) for a in attns]

    # sanity check against a pure-JAX reference of the same math
    ref_out, ref_attns = ref_forward(x.astype(jnp.float32), layer_params,
                                     pos_table)
    np.testing.assert_allclose(np.asarray(out, dtype=np.float32),
                               np.asarray(ref_out),
                               rtol=2e-3, atol=2e-3)
    for a, ra in zip(attns, ref_attns):
        np.testing.assert_allclose(np.asarray(a), np.asarray(ra),
                                   rtol=2e-3, atol=2e-3)

    print("KERNEL_OK")
</pallas_src>

<mosaic_0001>
module attributes {stable_mosaic.version = 11 : i64} {
  func.func @_fused_linear_kernel(%arg0: i32, %arg1: i32, %arg2: i32, %arg3: memref<32x64xf32, #tpu.memory_space<vmem>>, %arg4: memref<64x192xf32, #tpu.memory_space<vmem>>, %arg5: memref<1x192xf32, #tpu.memory_space<vmem>>, %arg6: memref<32x192xf32, #tpu.memory_space<vmem>>, %arg7: memref<32x192xf32, #tpu.memory_space<vmem>>) attributes {dimension_semantics = [#tpu.dimension_semantics<parallel>, #tpu.dimension_semantics<parallel>, #tpu.dimension_semantics<arbitrary>], iteration_bounds = array<i64: 1, 1, 1>, scalar_prefetch = 0 : i64, scratch_operands = 1 : i64, tpu.core_type = #tpu.core_type<tc>, window_params = [{transform_indices = @transform_0, window_bounds = array<i64: 32, 64>}, {transform_indices = @transform_1, window_bounds = array<i64: 64, 192>}, {transform_indices = @transform_2, window_bounds = array<i64: 1, 192>}, {transform_indices = @transform_3, window_bounds = array<i64: 32, 192>}]} {
    %c0_i32 = arith.constant 0 : i32
    %0 = arith.cmpi eq, %arg2, %c0_i32 : i32
    %1 = arith.extui %0 : i1 to i32
    %c0_i32_0 = arith.constant 0 : i32
    %2 = arith.cmpi ne, %1, %c0_i32_0 : i32
    scf.if %2 {
      %cst_10 = arith.constant 0.000000e+00 : f32
      %12 = vector.broadcast %cst_10 : f32 to vector<32x192xf32>
      %c0_11 = arith.constant 0 : index
      %c0_12 = arith.constant 0 : index
      %13 = vector.load %arg7[%c0_11, %c0_12] : memref<32x192xf32, #tpu.memory_space<vmem>>, vector<32x192xf32>
      tpu.vector_store %arg7[%c0_11, %c0_12], %12 {strides = array<i32>} : memref<32x192xf32, #tpu.memory_space<vmem>>, vector<32x192xf32>,
    } else {
    }
    %c0 = arith.constant 0 : index
    %c0_1 = arith.constant 0 : index
    %3 = vector.load %arg7[%c0, %c0_1] : memref<32x192xf32, #tpu.memory_space<vmem>>, vector<32x192xf32>
    %c0_2 = arith.constant 0 : index
    %c0_3 = arith.constant 0 : index
    %4 = vector.load %arg3[%c0_2, %c0_3] : memref<32x64xf32, #tpu.memory_space<vmem>>, vector<32x64xf32>
    %c0_4 = arith.constant 0 : index
    %c0_5 = arith.constant 0 : index
    %5 = vector.load %arg4[%c0_4, %c0_5] : memref<64x192xf32, #tpu.memory_space<vmem>>, vector<64x192xf32>
    %cst = arith.constant dense<0.000000e+00> : vector<32x192xf32>
    %6 = tpu.matmul %4, %5, %cst {dimension_numbers = #tpu.dot_dimension_numbers<[1], [0], [0], [1], [0, 0, 1, 1], [], []>} : vector<32x64xf32>, vector<64x192xf32>, vector<32x192xf32> -> vector<32x192xf32>
    %7 = arith.addf %3, %6 : vector<32x192xf32>
    %c0_6 = arith.constant 0 : index
    %c0_7 = arith.constant 0 : index
    %8 = vector.load %arg7[%c0_6, %c0_7] : memref<32x192xf32, #tpu.memory_space<vmem>>, vector<32x192xf32>
    tpu.vector_store %arg7[%c0_6, %c0_7], %7 {strides = array<i32>} : memref<32x192xf32, #tpu.memory_space<vmem>>, vector<32x192xf32>,
    %c0_i32_8 = arith.constant 0 : i32
    %9 = arith.cmpi eq, %arg2, %c0_i32_8 : i32
    %10 = arith.extui %9 : i1 to i32
    %c0_i32_9 = arith.constant 0 : i32
    %11 = arith.cmpi ne, %10, %c0_i32_9 : i32
    scf.if %11 {
      %c0_10 = arith.constant 0 : index
      %c0_11 = arith.constant 0 : index
      %12 = vector.load %arg7[%c0_10, %c0_11] : memref<32x192xf32, #tpu.memory_space<vmem>>, vector<32x192xf32>
      %c0_12 = arith.constant 0 : index
      %c0_13 = arith.constant 0 : index
      %13 = vector.load %arg5[%c0_12, %c0_13] : memref<1x192xf32, #tpu.memory_space<vmem>>, vector<1x192xf32>
      %14 = vector.broadcast %13 : vector<1x192xf32> to vector<32x192xf32>
      %15 = arith.addf %12, %14 : vector<32x192xf32>
      %c0_14 = arith.constant 0 : index
      %c0_15 = arith.constant 0 : index
      %16 = vector.load %arg6[%c0_14, %c0_15] : memref<32x192xf32, #tpu.memory_space<vmem>>, vector<32x192xf32>
      tpu.vector_store %arg6[%c0_14, %c0_15], %15 {strides = array<i32>} : memref<32x192xf32, #tpu.memory_space<vmem>>, vector<32x192xf32>,
    } else {
    }
    return
  }
  func.func @transform_0(%arg0: i32, %arg1: i32, %arg2: i32) -> (i32, i32) {
    %c0_i32 = arith.constant 0 : i32
    return %arg0, %arg2 : i32, i32
  }
  func.func @transform_1(%arg0: i32, %arg1: i32, %arg2: i32) -> (i32, i32) {
    %c0_i32 = arith.constant 0 : i32
    return %arg2, %arg1 : i32, i32
  }
  func.func @transform_2(%arg0: i32, %arg1: i32, %arg2: i32) -> (i32, i32) {
    %c0_i32 = arith.constant 0 : i32
    %c0_i32_0 = arith.constant 0 : i32
    return %c0_i32, %arg1 : i32, i32
  }
  func.func @transform_3(%arg0: i32, %arg1: i32, %arg2: i32) -> (i32, i32) {
    %c0_i32 = arith.constant 0 : i32
    return %arg0, %arg1 : i32, i32
  }
}

module attributes {stable_mosaic.version = 11 : i64} {
  func.func @_fused_linear_kernel(%arg0: i32, %arg1: i32, %arg2: i32, %arg3: memref<32x64xf32, #tpu.memory_space<vmem>>, %arg4: memref<64x128xf32, #tpu.memory_space<vmem>>, %arg5: memref<1x128xf32, #tpu.memory_space<vmem>>, %arg6: memref<32x128xf32, #tpu.memory_space<vmem>>, %arg7: memref<32x128xf32, #tpu.memory_space<vmem>>) attributes {dimension_semantics = [#tpu.dimension_semantics<parallel>, #tpu.dimension_semantics<parallel>, #tpu.dimension_semantics<arbitrary>], iteration_bounds = array<i64: 1, 1, 1>, scalar_prefetch = 0 : i64, scratch_operands = 1 : i64, tpu.core_type = #tpu.core_type<tc>, window_params = [{transform_indices = @transform_0, window_bounds = array<i64: 32, 64>}, {transform_indices = @transform_1, window_bounds = array<i64: 64, 128>}, {transform_indices = @transform_2, window_bounds = array<i64: 1, 128>}, {transform_indices = @transform_3, window_bounds = array<i64: 32, 128>}]} {
    %c0_i32 = arith.constant 0 : i32
    %0 = arith.cmpi eq, %arg2, %c0_i32 : i32
    %1 = arith.extui %0 : i1 to i32
    %c0_i32_0 = arith.constant 0 : i32
    %2 = arith.cmpi ne, %1, %c0_i32_0 : i32
    scf.if %2 {
      %cst_10 = arith.constant 0.000000e+00 : f32
      %12 = vector.broadcast %cst_10 : f32 to vector<32x128xf32>
      %c0_11 = arith.constant 0 : index
      %c0_12 = arith.constant 0 : index
      %13 = vector.load %arg7[%c0_11, %c0_12] : memref<32x128xf32, #tpu.memory_space<vmem>>, vector<32x128xf32>
      tpu.vector_store %arg7[%c0_11, %c0_12], %12 {strides = array<i32>} : memref<32x128xf32, #tpu.memory_space<vmem>>, vector<32x128xf32>,
    } else {
    }
    %c0 = arith.constant 0 : index
    %c0_1 = arith.constant 0 : index
    %3 = vector.load %arg7[%c0, %c0_1] : memref<32x128xf32, #tpu.memory_space<vmem>>, vector<32x128xf32>
    %c0_2 = arith.constant 0 : index
    %c0_3 = arith.constant 0 : index
    %4 = vector.load %arg3[%c0_2, %c0_3] : memref<32x64xf32, #tpu.memory_space<vmem>>, vector<32x64xf32>
    %c0_4 = arith.constant 0 : index
    %c0_5 = arith.constant 0 : index
    %5 = vector.load %arg4[%c0_4, %c0_5] : memref<64x128xf32, #tpu.memory_space<vmem>>, vector<64x128xf32>
    %cst = arith.constant dense<0.000000e+00> : vector<32x128xf32>
    %6 = tpu.matmul %4, %5, %cst {dimension_numbers = #tpu.dot_dimension_numbers<[1], [0], [0], [1], [0, 0, 1, 1], [], []>} : vector<32x64xf32>, vector<64x128xf32>, vector<32x128xf32> -> vector<32x128xf32>
    %7 = arith.addf %3, %6 : vector<32x128xf32>
    %c0_6 = arith.constant 0 : index
    %c0_7 = arith.constant 0 : index
    %8 = vector.load %arg7[%c0_6, %c0_7] : memref<32x128xf32, #tpu.memory_space<vmem>>, vector<32x128xf32>
    tpu.vector_store %arg7[%c0_6, %c0_7], %7 {strides = array<i32>} : memref<32x128xf32, #tpu.memory_space<vmem>>, vector<32x128xf32>,
    %c0_i32_8 = arith.constant 0 : i32
    %9 = arith.cmpi eq, %arg2, %c0_i32_8 : i32
    %10 = arith.extui %9 : i1 to i32
    %c0_i32_9 = arith.constant 0 : i32
    %11 = arith.cmpi ne, %10, %c0_i32_9 : i32
    scf.if %11 {
      %c0_10 = arith.constant 0 : index
      %c0_11 = arith.constant 0 : index
      %12 = vector.load %arg7[%c0_10, %c0_11] : memref<32x128xf32, #tpu.memory_space<vmem>>, vector<32x128xf32>
      %c0_12 = arith.constant 0 : index
      %c0_13 = arith.constant 0 : index
      %13 = vector.load %arg5[%c0_12, %c0_13] : memref<1x128xf32, #tpu.memory_space<vmem>>, vector<1x128xf32>
      %14 = vector.broadcast %13 : vector<1x128xf32> to vector<32x128xf32>
      %15 = arith.addf %12, %14 : vector<32x128xf32>
      %cst_14 = arith.constant 0.000000e+00 : f32
      %16 = vector.broadcast %cst_14 : f32 to vector<32x128xf32>
      %17 = arith.maximumf %15, %16 : vector<32x128xf32>
      %c0_15 = arith.constant 0 : index
      %c0_16 = arith.constant 0 : index
      %18 = vector.load %arg6[%c0_15, %c0_16] : memref<32x128xf32, #tpu.memory_space<vmem>>, vector<32x128xf32>
      tpu.vector_store %arg6[%c0_15, %c0_16], %17 {strides = array<i32>} : memref<32x128xf32, #tpu.memory_space<vmem>>, vector<32x128xf32>,
    } else {
    }
    return
  }
  func.func @transform_0(%arg0: i32, %arg1: i32, %arg2: i32) -> (i32, i32) {
    %c0_i32 = arith.constant 0 : i32
    return %arg0, %arg2 : i32, i32
  }
  func.func @transform_1(%arg0: i32, %arg1: i32, %arg2: i32) -> (i32, i32) {
    %c0_i32 = arith.constant 0 : i32
    return %arg2, %arg1 : i32, i32
  }
  func.func @transform_2(%arg0: i32, %arg1: i32, %arg2: i32) -> (i32, i32) {
    %c0_i32 = arith.constant 0 : i32
    %c0_i32_0 = arith.constant 0 : i32
    return %c0_i32, %arg1 : i32, i32
  }
  func.func @transform_3(%arg0: i32, %arg1: i32, %arg2: i32) -> (i32, i32) {
    %c0_i32 = arith.constant 0 : i32
    return %arg0, %arg1 : i32, i32
  }
}

module attributes {stable_mosaic.version = 11 : i64} {
  func.func @_attn_kernel(%arg0: i32, %arg1: i32, %arg2: memref<1x1x16x16xf32, #tpu.memory_space<vmem>>, %arg3: memref<1x1x16x16xf32, #tpu.memory_space<vmem>>, %arg4: memref<1x1x16x16xf32, #tpu.memory_space<vmem>>, %arg5: memref<1x1x16x16xf32, #tpu.memory_space<vmem>>, %arg6: memref<1x1x16x16xf32, #tpu.memory_space<vmem>>) attributes {dimension_semantics = [#tpu.dimension_semantics<parallel>, #tpu.dimension_semantics<parallel>], iteration_bounds = array<i64: 2, 4>, scalar_prefetch = 0 : i64, scratch_operands = 0 : i64, tpu.core_type = #tpu.core_type<tc>, window_params = [{transform_indices = @transform_0, window_bounds = array<i64: 1, 1, 16, 16>}, {transform_indices = @transform_1, window_bounds = array<i64: 1, 1, 16, 16>}, {transform_indices = @transform_2, window_bounds = array<i64: 1, 1, 16, 16>}, {transform_indices = @transform_3, window_bounds = array<i64: 1, 1, 16, 16>}, {transform_indices = @transform_4, window_bounds = array<i64: 1, 1, 16, 16>}]} {
    %c0 = arith.constant 0 : index
    %c0_0 = arith.constant 0 : index
    %c0_1 = arith.constant 0 : index
    %c0_2 = arith.constant 0 : index
    %0 = vector.load %arg2[%c0, %c0_0, %c0_1, %c0_2] : memref<1x1x16x16xf32, #tpu.memory_space<vmem>>, vector<1x1x16x16xf32>
    %1 = vector.shape_cast %0 : vector<1x1x16x16xf32> to vector<16x16xf32>
    %c0_3 = arith.constant 0 : index
    %c0_4 = arith.constant 0 : index
    %c0_5 = arith.constant 0 : index
    %c0_6 = arith.constant 0 : index
    %2 = vector.load %arg3[%c0_3, %c0_4, %c0_5, %c0_6] : memref<1x1x16x16xf32, #tpu.memory_space<vmem>>, vector<1x1x16x16xf32>
    %3 = vector.shape_cast %2 : vector<1x1x16x16xf32> to vector<16x16xf32>
    %c0_7 = arith.constant 0 : index
    %c0_8 = arith.constant 0 : index
    %c0_9 = arith.constant 0 : index
    %c0_10 = arith.constant 0 : index
    %4 = vector.load %arg4[%c0_7, %c0_8, %c0_9, %c0_10] : memref<1x1x16x16xf32, #tpu.memory_space<vmem>>, vector<1x1x16x16xf32>
    %5 = vector.shape_cast %4 : vector<1x1x16x16xf32> to vector<16x16xf32>
    %cst = arith.constant dense<0.000000e+00> : vector<16x16xf32>
    %6 = tpu.matmul %1, %3, %cst {dimension_numbers = #tpu.dot_dimension_numbers<[1], [1], [0], [0], [0, 0, 1, 0], [], []>} : vector<16x16xf32>, vector<16x16xf32>, vector<16x16xf32> -> vector<16x16xf32>
    %cst_11 = arith.constant 2.500000e-01 : f32
    %7 = vector.broadcast %cst_11 : f32 to vector<16x16xf32>
    %8 = arith.mulf %6, %7 : vector<16x16xf32>
    %cst_12 = arith.constant dense<0xFF800000> : vector<16xf32>
    %9 = vector.multi_reduction <maximumf>, %8, %cst_12 [1] : vector<16x16xf32> to vector<16xf32>
    %10 = vector.shape_cast %9 : vector<16xf32> to vector<16x1xf32>
    %11 = vector.broadcast %10 : vector<16x1xf32> to vector<16x16xf32>
    %12 = arith.subf %8, %11 : vector<16x16xf32>
    %13 = math.exp %12 : vector<16x16xf32>
    %cst_13 = arith.constant dense<0.000000e+00> : vector<16xf32>
    %14 = vector.multi_reduction <add>, %13, %cst_13 [1] : vector<16x16xf32> to vector<16xf32>
    %15 = vector.shape_cast %14 : vector<16xf32> to vector<16x1xf32>
    %16 = tpu.reciprocal %15 {approx = true} : vector<16x1xf32> -> vector<16x1xf32>
    %17 = arith.mulf %15, %16 : vector<16x1xf32>
    %cst_14 = arith.constant 2.000000e+00 : f32
    %18 = vector.broadcast %cst_14 : f32 to vector<16x1xf32>
    %19 = arith.subf %18, %17 : vector<16x1xf32>
    %20 = arith.mulf %16, %19 : vector<16x1xf32>
    %21 = vector.broadcast %20 : vector<16x1xf32> to vector<16x16xf32>
    %22 = arith.mulf %13, %21 : vector<16x16xf32>
    %cst_15 = arith.constant dense<0.000000e+00> : vector<16x16xf32>
    %23 = tpu.matmul %22, %5, %cst_15 {dimension_numbers = #tpu.dot_dimension_numbers<[1], [0], [0], [1], [0, 0, 1, 1], [], []>} : vector<16x16xf32>, vector<16x16xf32>, vector<16x16xf32> -> vector<16x16xf32>
    %c0_16 = arith.constant 0 : index
    %c0_17 = arith.constant 0 : index
    %c0_18 = arith.constant 0 : index
    %c0_19 = arith.constant 0 : index
    %24 = vector.load %arg5[%c0_16, %c0_17, %c0_18, %c0_19] : memref<1x1x16x16xf32, #tpu.memory_space<vmem>>, vector<1x1x16x16xf32>
    %25 = vector.shape_cast %24 : vector<1x1x16x16xf32> to vector<16x16xf32>
    %26 = vector.shape_cast %23 : vector<16x16xf32> to vector<1x1x16x16xf32>
    tpu.vector_store %arg5[%c0_16, %c0_17, %c0_18, %c0_19], %26 {strides = array<i32>} : memref<1x1x16x16xf32, #tpu.memory_space<vmem>>, vector<1x1x16x16xf32>,
    %c0_20 = arith.constant 0 : index
    %c0_21 = arith.constant 0 : index
    %c0_22 = arith.constant 0 : index
    %c0_23 = arith.constant 0 : index
    %27 = vector.load %arg6[%c0_20, %c0_21, %c0_22, %c0_23] : memref<1x1x16x16xf32, #tpu.memory_space<vmem>>, vector<1x1x16x16xf32>
    %28 = vector.shape_cast %27 : vector<1x1x16x16xf32> to vector<16x16xf32>
    %29 = vector.shape_cast %22 : vector<16x16xf32> to vector<1x1x16x16xf32>
    tpu.vector_store %arg6[%c0_20, %c0_21, %c0_22, %c0_23], %29 {strides = array<i32>} : memref<1x1x16x16xf32, #tpu.memory_space<vmem>>, vector<1x1x16x16xf32>,
    return
  }
  func.func @transform_0(%arg0: i32, %arg1: i32) -> (i32, i32, i32, i32) {
    %c0_i32 = arith.constant 0 : i32
    %c0_i32_0 = arith.constant 0 : i32
    %c0_i32_1 = arith.constant 0 : i32
    return %arg0, %arg1, %c0_i32, %c0_i32_0 : i32, i32, i32, i32
  }
  func.func @transform_1(%arg0: i32, %arg1: i32) -> (i32, i32, i32, i32) {
    %c4_i32 = arith.constant 4 : i32
    %0 = arith.addi %c4_i32, %arg1 : i32
    %c0_i32 = arith.constant 0 : i32
    %c0_i32_0 = arith.constant 0 : i32
    %c0_i32_1 = arith.constant 0 : i32
    return %arg0, %0, %c0_i32, %c0_i32_0 : i32, i32, i32, i32
  }
  func.func @transform_2(%arg0: i32, %arg1: i32) -> (i32, i32, i32, i32) {
    %c8_i32 = arith.constant 8 : i32
    %0 = arith.addi %c8_i32, %arg1 : i32
    %c0_i32 = arith.constant 0 : i32
    %c0_i32_0 = arith.constant 0 : i32
    %c0_i32_1 = arith.constant 0 : i32
    return %arg0, %0, %c0_i32, %c0_i32_0 : i32, i32, i32, i32
  }
  func.func @transform_3(%arg0: i32, %arg1: i32) -> (i32, i32, i32, i32) {
    %c0_i32 = arith.constant 0 : i32
    %c0_i32_0 = arith.constant 0 : i32
    %c0_i32_1 = arith.constant 0 : i32
    return %arg0, %arg1, %c0_i32, %c0_i32_0 : i32, i32, i32, i32
  }
  func.func @transform_4(%arg0: i32, %arg1: i32) -> (i32, i32, i32, i32) {
    %c0_i32 = arith.constant 0 : i32
    %c0_i32_0 = arith.constant 0 : i32
    %c0_i32_1 = arith.constant 0 : i32
    return %arg0, %arg1, %c0_i32, %c0_i32_0 : i32, i32, i32, i32
  }
}

module attributes {stable_mosaic.version = 11 : i64} {
  func.func @_fused_linear_kernel(%arg0: i32, %arg1: i32, %arg2: i32, %arg3: memref<32x64xf32, #tpu.memory_space<vmem>>, %arg4: memref<64x64xf32, #tpu.memory_space<vmem>>, %arg5: memref<1x64xf32, #tpu.memory_space<vmem>>, %arg6: memref<32x64xf32, #tpu.memory_space<vmem>>, %arg7: memref<32x64xf32, #tpu.memory_space<vmem>>, %arg8: memref<32x64xf32, #tpu.memory_space<vmem>>) attributes {dimension_semantics = [#tpu.dimension_semantics<parallel>, #tpu.dimension_semantics<parallel>, #tpu.dimension_semantics<arbitrary>], iteration_bounds = array<i64: 1, 1, 1>, scalar_prefetch = 0 : i64, scratch_operands = 1 : i64, tpu.core_type = #tpu.core_type<tc>, window_params = [{transform_indices = @transform_0, window_bounds = array<i64: 32, 64>}, {transform_indices = @transform_1, window_bounds = array<i64: 64, 64>}, {transform_indices = @transform_2, window_bounds = array<i64: 1, 64>}, {transform_indices = @transform_3, window_bounds = array<i64: 32, 64>}, {transform_indices = @transform_4, window_bounds = array<i64: 32, 64>}]} {
    %c0_i32 = arith.constant 0 : i32
    %0 = arith.cmpi eq, %arg2, %c0_i32 : i32
    %1 = arith.extui %0 : i1 to i32
    %c0_i32_0 = arith.constant 0 : i32
    %2 = arith.cmpi ne, %1, %c0_i32_0 : i32
    scf.if %2 {
      %cst_10 = arith.constant 0.000000e+00 : f32
      %12 = vector.broadcast %cst_10 : f32 to vector<32x64xf32>
      %c0_11 = arith.constant 0 : index
      %c0_12 = arith.constant 0 : index
      %13 = vector.load %arg8[%c0_11, %c0_12] : memref<32x64xf32, #tpu.memory_space<vmem>>, vector<32x64xf32>
      tpu.vector_store %arg8[%c0_11, %c0_12], %12 {strides = array<i32>} : memref<32x64xf32, #tpu.memory_space<vmem>>, vector<32x64xf32>,
    } else {
    }
    %c0 = arith.constant 0 : index
    %c0_1 = arith.constant 0 : index
    %3 = vector.load %arg8[%c0, %c0_1] : memref<32x64xf32, #tpu.memory_space<vmem>>, vector<32x64xf32>
    %c0_2 = arith.constant 0 : index
    %c0_3 = arith.constant 0 : index
    %4 = vector.load %arg3[%c0_2, %c0_3] : memref<32x64xf32, #tpu.memory_space<vmem>>, vector<32x64xf32>
    %c0_4 = arith.constant 0 : index
    %c0_5 = arith.constant 0 : index
    %5 = vector.load %arg4[%c0_4, %c0_5] : memref<64x64xf32, #tpu.memory_space<vmem>>, vector<64x64xf32>
    %cst = arith.constant dense<0.000000e+00> : vector<32x64xf32>
    %6 = tpu.matmul %4, %5, %cst {dimension_numbers = #tpu.dot_dimension_numbers<[1], [0], [0], [1], [0, 0, 1, 1], [], []>} : vector<32x64xf32>, vector<64x64xf32>, vector<32x64xf32> -> vector<32x64xf32>
    %7 = arith.addf %3, %6 : vector<32x64xf32>
    %c0_6 = arith.constant 0 : index
    %c0_7 = arith.constant 0 : index
    %8 = vector.load %arg8[%c0_6, %c0_7] : memref<32x64xf32, #tpu.memory_space<vmem>>, vector<32x64xf32>
    tpu.vector_store %arg8[%c0_6, %c0_7], %7 {strides = array<i32>} : memref<32x64xf32, #tpu.memory_space<vmem>>, vector<32x64xf32>,
    %c0_i32_8 = arith.constant 0 : i32
    %9 = arith.cmpi eq, %arg2, %c0_i32_8 : i32
    %10 = arith.extui %9 : i1 to i32
    %c0_i32_9 = arith.constant 0 : i32
    %11 = arith.cmpi ne, %10, %c0_i32_9 : i32
    scf.if %11 {
      %c0_10 = arith.constant 0 : index
      %c0_11 = arith.constant 0 : index
      %12 = vector.load %arg8[%c0_10, %c0_11] : memref<32x64xf32, #tpu.memory_space<vmem>>, vector<32x64xf32>
      %c0_12 = arith.constant 0 : index
      %c0_13 = arith.constant 0 : index
      %13 = vector.load %arg5[%c0_12, %c0_13] : memref<1x64xf32, #tpu.memory_space<vmem>>, vector<1x64xf32>
      %14 = vector.broadcast %13 : vector<1x64xf32> to vector<32x64xf32>
      %15 = arith.addf %12, %14 : vector<32x64xf32>
      %c0_14 = arith.constant 0 : index
      %c0_15 = arith.constant 0 : index
      %16 = vector.load %arg6[%c0_14, %c0_15] : memref<32x64xf32, #tpu.memory_space<vmem>>, vector<32x64xf32>
      %17 = arith.addf %15, %16 : vector<32x64xf32>
      %cst_16 = arith.constant dense<0.000000e+00> : vector<32xf32>
      %18 = vector.multi_reduction <add>, %17, %cst_16 [1] : vector<32x64xf32> to vector<32xf32>
      %19 = vector.shape_cast %18 : vector<32xf32> to vector<32x1xf32>
      %cst_17 = arith.constant 6.400000e+01 : f32
      %20 = vector.broadcast %cst_17 : f32 to vector<32x1xf32>
      %21 = arith.divf %19, %20 : vector<32x1xf32>
      %22 = vector.broadcast %21 : vector<32x1xf32> to vector<32x64xf32>
      %23 = arith.subf %17, %22 : vector<32x64xf32>
      %24 = arith.mulf %23, %23 : vector<32x64xf32>
      %cst_18 = arith.constant dense<0.000000e+00> : vector<32xf32>
      %25 = vector.multi_reduction <add>, %24, %cst_18 [1] : vector<32x64xf32> to vector<32xf32>
      %26 = vector.shape_cast %25 : vector<32xf32> to vector<32x1xf32>
      %cst_19 = arith.constant 6.400000e+01 : f32
      %27 = vector.broadcast %cst_19 : f32 to vector<32x1xf32>
      %28 = arith.divf %26, %27 : vector<32x1xf32>
      %29 = vector.broadcast %21 : vector<32x1xf32> to vector<32x64xf32>
      %30 = arith.subf %17, %29 : vector<32x64xf32>
      %cst_20 = arith.constant 9.99999974E-6 : f32
      %31 = vector.broadcast %cst_20 : f32 to vector<32x1xf32>
      %32 = arith.addf %28, %31 : vector<32x1xf32>
      %33 = math.rsqrt %32 : vector<32x1xf32>
      %34 = vector.broadcast %33 : vector<32x1xf32> to vector<32x64xf32>
      %35 = arith.mulf %30, %34 : vector<32x64xf32>
      %c0_21 = arith.constant 0 : index
      %c0_22 = arith.constant 0 : index
      %36 = vector.load %arg7[%c0_21, %c0_22] : memref<32x64xf32, #tpu.memory_space<vmem>>, vector<32x64xf32>
      tpu.vector_store %arg7[%c0_21, %c0_22], %35 {strides = array<i32>} : memref<32x64xf32, #tpu.memory_space<vmem>>, vector<32x64xf32>,
    } else {
    }
    return
  }
  func.func @transform_0(%arg0: i32, %arg1: i32, %arg2: i32) -> (i32, i32) {
    %c0_i32 = arith.constant 0 : i32
    return %arg0, %arg2 : i32, i32
  }
  func.func @transform_1(%arg0: i32, %arg1: i32, %arg2: i32) -> (i32, i32) {
    %c0_i32 = arith.constant 0 : i32
    return %arg2, %arg1 : i32, i32
  }
  func.func @transform_2(%arg0: i32, %arg1: i32, %arg2: i32) -> (i32, i32) {
    %c0_i32 = arith.constant 0 : i32
    %c0_i32_0 = arith.constant 0 : i32
    return %c0_i32, %arg1 : i32, i32
  }
  func.func @transform_3(%arg0: i32, %arg1: i32, %arg2: i32) -> (i32, i32) {
    %c0_i32 = arith.constant 0 : i32
    return %arg0, %arg1 : i32, i32
  }
  func.func @transform_4(%arg0: i32, %arg1: i32, %arg2: i32) -> (i32, i32) {
    %c0_i32 = arith.constant 0 : i32
    return %arg0, %arg1 : i32, i32
  }
}

module attributes {stable_mosaic.version = 11 : i64} {
  func.func @_fused_linear_kernel(%arg0: i32, %arg1: i32, %arg2: i32, %arg3: memref<32x64xf32, #tpu.memory_space<vmem>>, %arg4: memref<64x192xf32, #tpu.memory_space<vmem>>, %arg5: memref<1x192xf32, #tpu.memory_space<vmem>>, %arg6: memref<32x192xf32, #tpu.memory_space<vmem>>, %arg7: memref<32x192xf32, #tpu.memory_space<vmem>>) attributes {dimension_semantics = [#tpu.dimension_semantics<parallel>, #tpu.dimension_semantics<parallel>, #tpu.dimension_semantics<arbitrary>], iteration_bounds = array<i64: 1, 1, 1>, scalar_prefetch = 0 : i64, scratch_operands = 1 : i64, tpu.core_type = #tpu.core_type<tc>, window_params = [{transform_indices = @transform_0, window_bounds = array<i64: 32, 64>}, {transform_indices = @transform_1, window_bounds = array<i64: 64, 192>}, {transform_indices = @transform_2, window_bounds = array<i64: 1, 192>}, {transform_indices = @transform_3, window_bounds = array<i64: 32, 192>}]} {
    %c0_i32 = arith.constant 0 : i32
    %0 = arith.cmpi eq, %arg2, %c0_i32 : i32
    %1 = arith.extui %0 : i1 to i32
    %c0_i32_0 = arith.constant 0 : i32
    %2 = arith.cmpi ne, %1, %c0_i32_0 : i32
    scf.if %2 {
      %cst_10 = arith.constant 0.000000e+00 : f32
      %12 = vector.broadcast %cst_10 : f32 to vector<32x192xf32>
      %c0_11 = arith.constant 0 : index
      %c0_12 = arith.constant 0 : index
      %13 = vector.load %arg7[%c0_11, %c0_12] : memref<32x192xf32, #tpu.memory_space<vmem>>, vector<32x192xf32>
      tpu.vector_store %arg7[%c0_11, %c0_12], %12 {strides = array<i32>} : memref<32x192xf32, #tpu.memory_space<vmem>>, vector<32x192xf32>,
    } else {
    }
    %c0 = arith.constant 0 : index
    %c0_1 = arith.constant 0 : index
    %3 = vector.load %arg7[%c0, %c0_1] : memref<32x192xf32, #tpu.memory_space<vmem>>, vector<32x192xf32>
    %c0_2 = arith.constant 0 : index
    %c0_3 = arith.constant 0 : index
    %4 = vector.load %arg3[%c0_2, %c0_3] : memref<32x64xf32, #tpu.memory_space<vmem>>, vector<32x64xf32>
    %c0_4 = arith.constant 0 : index
    %c0_5 = arith.constant 0 : index
    %5 = vector.load %arg4[%c0_4, %c0_5] : memref<64x192xf32, #tpu.memory_space<vmem>>, vector<64x192xf32>
    %cst = arith.constant dense<0.000000e+00> : vector<32x192xf32>
    %6 = tpu.matmul %4, %5, %cst {dimension_numbers = #tpu.dot_dimension_numbers<[1], [0], [0], [1], [0, 0, 1, 1], [], []>} : vector<32x64xf32>, vector<64x192xf32>, vector<32x192xf32> -> vector<32x192xf32>
    %7 = arith.addf %3, %6 : vector<32x192xf32>
    %c0_6 = arith.constant 0 : index
    %c0_7 = arith.constant 0 : index
    %8 = vector.load %arg7[%c0_6, %c0_7] : memref<32x192xf32, #tpu.memory_space<vmem>>, vector<32x192xf32>
    tpu.vector_store %arg7[%c0_6, %c0_7], %7 {strides = array<i32>} : memref<32x192xf32, #tpu.memory_space<vmem>>, vector<32x192xf32>,
    %c0_i32_8 = arith.constant 0 : i32
    %9 = arith.cmpi eq, %arg2, %c0_i32_8 : i32
    %10 = arith.extui %9 : i1 to i32
    %c0_i32_9 = arith.constant 0 : i32
    %11 = arith.cmpi ne, %10, %c0_i32_9 : i32
    scf.if %11 {
      %c0_10 = arith.constant 0 : index
      %c0_11 = arith.constant 0 : index
      %12 = vector.load %arg7[%c0_10, %c0_11] : memref<32x192xf32, #tpu.memory_space<vmem>>, vector<32x192xf32>
      %c0_12 = arith.constant 0 : index
      %c0_13 = arith.constant 0 : index
      %13 = vector.load %arg5[%c0_12, %c0_13] : memref<1x192xf32, #tpu.memory_space<vmem>>, vector<1x192xf32>
      %14 = vector.broadcast %13 : vector<1x192xf32> to vector<32x192xf32>
      %15 = arith.addf %12, %14 : vector<32x192xf32>
      %c0_14 = arith.constant 0 : index
      %c0_15 = arith.constant 0 : index
      %16 = vector.load %arg6[%c0_14, %c0_15] : memref<32x192xf32, #tpu.memory_space<vmem>>, vector<32x192xf32>
      tpu.vector_store %arg6[%c0_14, %c0_15], %15 {strides = array<i32>} : memref<32x192xf32, #tpu.memory_space<vmem>>, vector<32x192xf32>,
    } else {
    }
    return
  }
  func.func @transform_0(%arg0: i32, %arg1: i32, %arg2: i32) -> (i32, i32) {
    %c0_i32 = arith.constant 0 : i32
    return %arg0, %arg2 : i32, i32
  }
  func.func @transform_1(%arg0: i32, %arg1: i32, %arg2: i32) -> (i32, i32) {
    %c0_i32 = arith.constant 0 : i32
    return %arg2, %arg1 : i32, i32
  }
  func.func @transform_2(%arg0: i32, %arg1: i32, %arg2: i32) -> (i32, i32) {
    %c0_i32 = arith.constant 0 : i32
    %c0_i32_0 = arith.constant 0 : i32
    return %c0_i32, %arg1 : i32, i32
  }
  func.func @transform_3(%arg0: i32, %arg1: i32, %arg2: i32) -> (i32, i32) {
    %c0_i32 = arith.constant 0 : i32
    return %arg0, %arg1 : i32, i32
  }
}

module attributes {stable_mosaic.version = 11 : i64} {
  func.func @_fused_linear_kernel(%arg0: i32, %arg1: i32, %arg2: i32, %arg3: memref<32x128xf32, #tpu.memory_space<vmem>>, %arg4: memref<128x64xf32, #tpu.memory_space<vmem>>, %arg5: memref<1x64xf32, #tpu.memory_space<vmem>>, %arg6: memref<32x64xf32, #tpu.memory_space<vmem>>, %arg7: memref<32x64xf32, #tpu.memory_space<vmem>>, %arg8: memref<32x64xf32, #tpu.memory_space<vmem>>) attributes {dimension_semantics = [#tpu.dimension_semantics<parallel>, #tpu.dimension_semantics<parallel>, #tpu.dimension_semantics<arbitrary>], iteration_bounds = array<i64: 1, 1, 1>, scalar_prefetch = 0 : i64, scratch_operands = 1 : i64, tpu.core_type = #tpu.core_type<tc>, window_params = [{transform_indices = @transform_0, window_bounds = array<i64: 32, 128>}, {transform_indices = @transform_1, window_bounds = array<i64: 128, 64>}, {transform_indices = @transform_2, window_bounds = array<i64: 1, 64>}, {transform_indices = @transform_3, window_bounds = array<i64: 32, 64>}, {transform_indices = @transform_4, window_bounds = array<i64: 32, 64>}]} {
    %c0_i32 = arith.constant 0 : i32
    %0 = arith.cmpi eq, %arg2, %c0_i32 : i32
    %1 = arith.extui %0 : i1 to i32
    %c0_i32_0 = arith.constant 0 : i32
    %2 = arith.cmpi ne, %1, %c0_i32_0 : i32
    scf.if %2 {
      %cst_10 = arith.constant 0.000000e+00 : f32
      %12 = vector.broadcast %cst_10 : f32 to vector<32x64xf32>
      %c0_11 = arith.constant 0 : index
      %c0_12 = arith.constant 0 : index
      %13 = vector.load %arg8[%c0_11, %c0_12] : memref<32x64xf32, #tpu.memory_space<vmem>>, vector<32x64xf32>
      tpu.vector_store %arg8[%c0_11, %c0_12], %12 {strides = array<i32>} : memref<32x64xf32, #tpu.memory_space<vmem>>, vector<32x64xf32>,
    } else {
    }
    %c0 = arith.constant 0 : index
    %c0_1 = arith.constant 0 : index
    %3 = vector.load %arg8[%c0, %c0_1] : memref<32x64xf32, #tpu.memory_space<vmem>>, vector<32x64xf32>
    %c0_2 = arith.constant 0 : index
    %c0_3 = arith.constant 0 : index
    %4 = vector.load %arg3[%c0_2, %c0_3] : memref<32x128xf32, #tpu.memory_space<vmem>>, vector<32x128xf32>
    %c0_4 = arith.constant 0 : index
    %c0_5 = arith.constant 0 : index
    %5 = vector.load %arg4[%c0_4, %c0_5] : memref<128x64xf32, #tpu.memory_space<vmem>>, vector<128x64xf32>
    %cst = arith.constant dense<0.000000e+00> : vector<32x64xf32>
    %6 = tpu.matmul %4, %5, %cst {dimension_numbers = #tpu.dot_dimension_numbers<[1], [0], [0], [1], [0, 0, 1, 1], [], []>} : vector<32x128xf32>, vector<128x64xf32>, vector<32x64xf32> -> vector<32x64xf32>
    %7 = arith.addf %3, %6 : vector<32x64xf32>
    %c0_6 = arith.constant 0 : index
    %c0_7 = arith.constant 0 : index
    %8 = vector.load %arg8[%c0_6, %c0_7] : memref<32x64xf32, #tpu.memory_space<vmem>>, vector<32x64xf32>
    tpu.vector_store %arg8[%c0_6, %c0_7], %7 {strides = array<i32>} : memref<32x64xf32, #tpu.memory_space<vmem>>, vector<32x64xf32>,
    %c0_i32_8 = arith.constant 0 : i32
    %9 = arith.cmpi eq, %arg2, %c0_i32_8 : i32
    %10 = arith.extui %9 : i1 to i32
    %c0_i32_9 = arith.constant 0 : i32
    %11 = arith.cmpi ne, %10, %c0_i32_9 : i32
    scf.if %11 {
      %c0_10 = arith.constant 0 : index
      %c0_11 = arith.constant 0 : index
      %12 = vector.load %arg8[%c0_10, %c0_11] : memref<32x64xf32, #tpu.memory_space<vmem>>, vector<32x64xf32>
      %c0_12 = arith.constant 0 : index
      %c0_13 = arith.constant 0 : index
      %13 = vector.load %arg5[%c0_12, %c0_13] : memref<1x64xf32, #tpu.memory_space<vmem>>, vector<1x64xf32>
      %14 = vector.broadcast %13 : vector<1x64xf32> to vector<32x64xf32>
      %15 = arith.addf %12, %14 : vector<32x64xf32>
      %c0_14 = arith.constant 0 : index
      %c0_15 = arith.constant 0 : index
      %16 = vector.load %arg6[%c0_14, %c0_15] : memref<32x64xf32, #tpu.memory_space<vmem>>, vector<32x64xf32>
      %17 = arith.addf %15, %16 : vector<32x64xf32>
      %cst_16 = arith.constant dense<0.000000e+00> : vector<32xf32>
      %18 = vector.multi_reduction <add>, %17, %cst_16 [1] : vector<32x64xf32> to vector<32xf32>
      %19 = vector.shape_cast %18 : vector<32xf32> to vector<32x1xf32>
      %cst_17 = arith.constant 6.400000e+01 : f32
      %20 = vector.broadcast %cst_17 : f32 to vector<32x1xf32>
      %21 = arith.divf %19, %20 : vector<32x1xf32>
      %22 = vector.broadcast %21 : vector<32x1xf32> to vector<32x64xf32>
      %23 = arith.subf %17, %22 : vector<32x64xf32>
      %24 = arith.mulf %23, %23 : vector<32x64xf32>
      %cst_18 = arith.constant dense<0.000000e+00> : vector<32xf32>
      %25 = vector.multi_reduction <add>, %24, %cst_18 [1] : vector<32x64xf32> to vector<32xf32>
      %26 = vector.shape_cast %25 : vector<32xf32> to vector<32x1xf32>
      %cst_19 = arith.constant 6.400000e+01 : f32
      %27 = vector.broadcast %cst_19 : f32 to vector<32x1xf32>
      %28 = arith.divf %26, %27 : vector<32x1xf32>
      %29 = vector.broadcast %21 : vector<32x1xf32> to vector<32x64xf32>
      %30 = arith.subf %17, %29 : vector<32x64xf32>
      %cst_20 = arith.constant 9.99999974E-6 : f32
      %31 = vector.broadcast %cst_20 : f32 to vector<32x1xf32>
      %32 = arith.addf %28, %31 : vector<32x1xf32>
      %33 = math.rsqrt %32 : vector<32x1xf32>
      %34 = vector.broadcast %33 : vector<32x1xf32> to vector<32x64xf32>
      %35 = arith.mulf %30, %34 : vector<32x64xf32>
      %c0_21 = arith.constant 0 : index
      %c0_22 = arith.constant 0 : index
      %36 = vector.load %arg7[%c0_21, %c0_22] : memref<32x64xf32, #tpu.memory_space<vmem>>, vector<32x64xf32>
      tpu.vector_store %arg7[%c0_21, %c0_22], %35 {strides = array<i32>} : memref<32x64xf32, #tpu.memory_space<vmem>>, vector<32x64xf32>,
    } else {
    }
    return
  }
  func.func @transform_0(%arg0: i32, %arg1: i32, %arg2: i32) -> (i32, i32) {
    %c0_i32 = arith.constant 0 : i32
    return %arg0, %arg2 : i32, i32
  }
  func.func @transform_1(%arg0: i32, %arg1: i32, %arg2: i32) -> (i32, i32) {
    %c0_i32 = arith.constant 0 : i32
    return %arg2, %arg1 : i32, i32
  }
  func.func @transform_2(%arg0: i32, %arg1: i32, %arg2: i32) -> (i32, i32) {
    %c0_i32 = arith.constant 0 : i32
    %c0_i32_0 = arith.constant 0 : i32
    return %c0_i32, %arg1 : i32, i32
  }
  func.func @transform_3(%arg0: i32, %arg1: i32, %arg2: i32) -> (i32, i32) {
    %c0_i32 = arith.constant 0 : i32
    return %arg0, %arg1 : i32, i32
  }
  func.func @transform_4(%arg0: i32, %arg1: i32, %arg2: i32) -> (i32, i32) {
    %c0_i32 = arith.constant 0 : i32
    return %arg0, %arg1 : i32, i32
  }
}

module attributes {stable_mosaic.version = 11 : i64} {
  func.func @_fused_linear_kernel(%arg0: i32, %arg1: i32, %arg2: i32, %arg3: memref<32x128xf32, #tpu.memory_space<vmem>>, %arg4: memref<128x64xf32, #tpu.memory_space<vmem>>, %arg5: memref<1x64xf32, #tpu.memory_space<vmem>>, %arg6: memref<32x64xf32, #tpu.memory_space<vmem>>, %arg7: memref<32x64xf32, #tpu.memory_space<vmem>>, %arg8: memref<32x64xf32, #tpu.memory_space<vmem>>) attributes {dimension_semantics = [#tpu.dimension_semantics<parallel>, #tpu.dimension_semantics<parallel>, #tpu.dimension_semantics<arbitrary>], iteration_bounds = array<i64: 1, 1, 1>, scalar_prefetch = 0 : i64, scratch_operands = 1 : i64, tpu.core_type = #tpu.core_type<tc>, window_params = [{transform_indices = @transform_0, window_bounds = array<i64: 32, 128>}, {transform_indices = @transform_1, window_bounds = array<i64: 128, 64>}, {transform_indices = @transform_2, window_bounds = array<i64: 1, 64>}, {transform_indices = @transform_3, window_bounds = array<i64: 32, 64>}, {transform_indices = @transform_4, window_bounds = array<i64: 32, 64>}]} {
    %c0_i32 = arith.constant 0 : i32
    %0 = arith.cmpi eq, %arg2, %c0_i32 : i32
    %1 = arith.extui %0 : i1 to i32
    %c0_i32_0 = arith.constant 0 : i32
    %2 = arith.cmpi ne, %1, %c0_i32_0 : i32
    scf.if %2 {
      %cst_10 = arith.constant 0.000000e+00 : f32
      %12 = vector.broadcast %cst_10 : f32 to vector<32x64xf32>
      %c0_11 = arith.constant 0 : index
      %c0_12 = arith.constant 0 : index
      %13 = vector.load %arg8[%c0_11, %c0_12] : memref<32x64xf32, #tpu.memory_space<vmem>>, vector<32x64xf32>
      tpu.vector_store %arg8[%c0_11, %c0_12], %12 {strides = array<i32>} : memref<32x64xf32, #tpu.memory_space<vmem>>, vector<32x64xf32>,
    } else {
    }
    %c0 = arith.constant 0 : index
    %c0_1 = arith.constant 0 : index
    %3 = vector.load %arg8[%c0, %c0_1] : memref<32x64xf32, #tpu.memory_space<vmem>>, vector<32x64xf32>
    %c0_2 = arith.constant 0 : index
    %c0_3 = arith.constant 0 : index
    %4 = vector.load %arg3[%c0_2, %c0_3] : memref<32x128xf32, #tpu.memory_space<vmem>>, vector<32x128xf32>
    %c0_4 = arith.constant 0 : index
    %c0_5 = arith.constant 0 : index
    %5 = vector.load %arg4[%c0_4, %c0_5] : memref<128x64xf32, #tpu.memory_space<vmem>>, vector<128x64xf32>
    %cst = arith.constant dense<0.000000e+00> : vector<32x64xf32>
    %6 = tpu.matmul %4, %5, %cst {dimension_numbers = #tpu.dot_dimension_numbers<[1], [0], [0], [1], [0, 0, 1, 1], [], []>} : vector<32x128xf32>, vector<128x64xf32>, vector<32x64xf32> -> vector<32x64xf32>
    %7 = arith.addf %3, %6 : vector<32x64xf32>
    %c0_6 = arith.constant 0 : index
    %c0_7 = arith.constant 0 : index
    %8 = vector.load %arg8[%c0_6, %c0_7] : memref<32x64xf32, #tpu.memory_space<vmem>>, vector<32x64xf32>
    tpu.vector_store %arg8[%c0_6, %c0_7], %7 {strides = array<i32>} : memref<32x64xf32, #tpu.memory_space<vmem>>, vector<32x64xf32>,
    %c0_i32_8 = arith.constant 0 : i32
    %9 = arith.cmpi eq, %arg2, %c0_i32_8 : i32
    %10 = arith.extui %9 : i1 to i32
    %c0_i32_9 = arith.constant 0 : i32
    %11 = arith.cmpi ne, %10, %c0_i32_9 : i32
    scf.if %11 {
      %c0_10 = arith.constant 0 : index
      %c0_11 = arith.constant 0 : index
      %12 = vector.load %arg8[%c0_10, %c0_11] : memref<32x64xf32, #tpu.memory_space<vmem>>, vector<32x64xf32>
      %c0_12 = arith.constant 0 : index
      %c0_13 = arith.constant 0 : index
      %13 = vector.load %arg5[%c0_12, %c0_13] : memref<1x64xf32, #tpu.memory_space<vmem>>, vector<1x64xf32>
      %14 = vector.broadcast %13 : vector<1x64xf32> to vector<32x64xf32>
      %15 = arith.addf %12, %14 : vector<32x64xf32>
      %c0_14 = arith.constant 0 : index
      %c0_15 = arith.constant 0 : index
      %16 = vector.load %arg6[%c0_14, %c0_15] : memref<32x64xf32, #tpu.memory_space<vmem>>, vector<32x64xf32>
      %17 = arith.addf %15, %16 : vector<32x64xf32>
      %cst_16 = arith.constant dense<0.000000e+00> : vector<32xf32>
      %18 = vector.multi_reduction <add>, %17, %cst_16 [1] : vector<32x64xf32> to vector<32xf32>
      %19 = vector.shape_cast %18 : vector<32xf32> to vector<32x1xf32>
      %cst_17 = arith.constant 6.400000e+01 : f32
      %20 = vector.broadcast %cst_17 : f32 to vector<32x1xf32>
      %21 = arith.divf %19, %20 : vector<32x1xf32>
      %22 = vector.broadcast %21 : vector<32x1xf32> to vector<32x64xf32>
      %23 = arith.subf %17, %22 : vector<32x64xf32>
      %24 = arith.mulf %23, %23 : vector<32x64xf32>
      %cst_18 = arith.constant dense<0.000000e+00> : vector<32xf32>
      %25 = vector.multi_reduction <add>, %24, %cst_18 [1] : vector<32x64xf32> to vector<32xf32>
      %26 = vector.shape_cast %25 : vector<32xf32> to vector<32x1xf32>
      %cst_19 = arith.constant 6.400000e+01 : f32
      %27 = vector.broadcast %cst_19 : f32 to vector<32x1xf32>
      %28 = arith.divf %26, %27 : vector<32x1xf32>
      %29 = vector.broadcast %21 : vector<32x1xf32> to vector<32x64xf32>
      %30 = arith.subf %17, %29 : vector<32x64xf32>
      %cst_20 = arith.constant 9.99999974E-6 : f32
      %31 = vector.broadcast %cst_20 : f32 to vector<32x1xf32>
      %32 = arith.addf %28, %31 : vector<32x1xf32>
      %33 = math.rsqrt %32 : vector<32x1xf32>
      %34 = vector.broadcast %33 : vector<32x1xf32> to vector<32x64xf32>
      %35 = arith.mulf %30, %34 : vector<32x64xf32>
      %c0_21 = arith.constant 0 : index
      %c0_22 = arith.constant 0 : index
      %36 = vector.load %arg7[%c0_21, %c0_22] : memref<32x64xf32, #tpu.memory_space<vmem>>, vector<32x64xf32>
      tpu.vector_store %arg7[%c0_21, %c0_22], %35 {strides = array<i32>} : memref<32x64xf32, #tpu.memory_space<vmem>>, vector<32x64xf32>,
    } else {
    }
    return
  }
  func.func @transform_0(%arg0: i32, %arg1: i32, %arg2: i32) -> (i32, i32) {
    %c0_i32 = arith.constant 0 : i32
    return %arg0, %arg2 : i32, i32
  }
  func.func @transform_1(%arg0: i32, %arg1: i32, %arg2: i32) -> (i32, i32) {
    %c0_i32 = arith.constant 0 : i32
    return %arg2, %arg1 : i32, i32
  }
  func.func @transform_2(%arg0: i32, %arg1: i32, %arg2: i32) -> (i32, i32) {
    %c0_i32 = arith.constant 0 : i32
    %c0_i32_0 = arith.constant 0 : i32
    return %c0_i32, %arg1 : i32, i32
  }
  func.func @transform_3(%arg0: i32, %arg1: i32, %arg2: i32) -> (i32, i32) {
    %c0_i32 = arith.constant 0 : i32
    return %arg0, %arg1 : i32, i32
  }
  func.func @transform_4(%arg0: i32, %arg1: i32, %arg2: i32) -> (i32, i32) {
    %c0_i32 = arith.constant 0 : i32
    return %arg0, %arg1 : i32, i32
  }
}

</mosaic_0001>

<llo_original>
// kernel: encoder_forward.13
$region0: #{encoder_forward.13}
  #allocation0 [shape = 'u32[]', space=smem, size = 0x4, offset = 0x4, fixed_abs, tag = 'smem constant byte address 0x4 - core index']
  #allocation1 [shape = 'u32[72,128]{1,0:T(1,128)}', space=vmem, size = 0x9000, scoped, tag = 'internal scratch']
  #allocation2 [shape = 'f32[32,128]{1,0:T(8,128)}', space=vmem, size = 0x4000, scoped, tag = 'scratch operand']
  %s0 = inlined_call_operand.vmem [shape: f32[32,64], index: 0, kind: input, shape index: {}]
  %s1 = inlined_call_operand.vmem [shape: f32[64,128], index: 1, kind: input, shape index: {}]
  %s2 = inlined_call_operand.vmem [shape: f32[1,128], index: 2, kind: input, shape index: {}]
  %s3 = inlined_call_operand.vmem [shape: f32[32,128], index: 3, kind: output, shape index: {}]
  %s4 = sld [smem:[#allocation0]]
  $region30: #{encoder_forward.13} parent=0
    _
  %s6 = ssub.s32 1, %s4
  %s7 = scalar_select 0, %s6, %s4
  // Predicated region
  $region2: #{encoder_forward.13} parent=0 // pred_check
    _
  $region3: #{encoder_forward.13} parent=0 // pred_check_branch
    %9 = sbr.rel (0) target = $region5
  $region4: #{encoder_forward.13} parent=0 // pred_region
    _
  $region5: #{encoder_forward.13} parent=0 // pred_fallthru
    _
  // Predicated region
  $region6: #{encoder_forward.13} parent=0 // pred_check
    _
  $region7: #{encoder_forward.13} parent=0 // pred_check_branch
    %11 = sbr.rel (0) target = $region9
  $region8: #{encoder_forward.13} parent=0 // pred_region
    _
  $region9: #{encoder_forward.13} parent=0 // pred_fallthru
    _
  // Predicated region
  $region10: #{encoder_forward.13} parent=0 // pred_check
    _
  $region11: #{encoder_forward.13} parent=0 // pred_check_branch
    %13 = sbr.rel (0) target = $region13
  $region12: #{encoder_forward.13} parent=0 // pred_region
    _
  $region13: #{encoder_forward.13} parent=0 // pred_fallthru
    _
  %p14 = scmp.eq.s32.totalorder 0, 0
  // Predicated region
  $region14: #{encoder_forward.13} parent=0 // pred_check
    %p15 = pneg %p14
  $region15: #{encoder_forward.13} parent=0 // pred_check_branch
    %17 = sbr.rel (%p15) target = $region17
  $region16: #{encoder_forward.13} parent=0 // pred_region
    %18 = vst [vmem:[#allocation2] sm:$0xff] 0.0
    %19 = vst [vmem:[#allocation2 + $0x8] sm:$0xff] 0.0
    %20 = vst [vmem:[#allocation2 + $0x10] sm:$0xff] 0.0
    %21 = vst [vmem:[#allocation2 + $0x18] sm:$0xff] 0.0
  $region17: #{encoder_forward.13} parent=0 // pred_fallthru
    _
  %v22 = vld [vmem:[#allocation2] sm:$0xff]
  %v23 = vld [vmem:[#allocation2 + $0x8] sm:$0xff]
  %v24 = vld [vmem:[#allocation2 + $0x10] sm:$0xff]
  %v25 = vld [vmem:[#allocation2 + $0x18] sm:$0xff]
  %v26 = vld [vmem:[%s0] sm:$0xff]
  %v27 = vld [vmem:[%s0 + $0x8] sm:$0xff]
  %v28 = vld [vmem:[%s0 + $0x10] sm:$0xff]
  %v29 = vld [vmem:[%s0 + $0x18] sm:$0xff]
  %v30 = vld [vmem:[%s1] sm:$0xff]
  %v31 = vld [vmem:[%s1 + $0x8] sm:$0xff]
  %v32 = vld [vmem:[%s1 + $0x10] sm:$0xff]
  %v33 = vld [vmem:[%s1 + $0x18] sm:$0xff]
  %v34 = vld [vmem:[%s1 + $0x20] sm:$0xff]
  %v35 = vld [vmem:[%s1 + $0x28] sm:$0xff]
  %v36 = vld [vmem:[%s1 + $0x30] sm:$0xff]
  %v37 = vld [vmem:[%s1 + $0x38] sm:$0xff]
  %vm38 = vcmask 523264
  %v40 = vsel %vm38, %v26, 0
  %v43 = vsel %vm38, %v27, 0
  %v46 = vsel %vm38, %v28, 0
  %v49 = vsel %vm38, %v29, 0
  %51 = vmatpush.msra.mxu0 0.0
  %52 = vmatpush.msra.mxu0 0.0
  %53 = vmatpush.msra.mxu0 0.0
  %54 = vmatpush.msra.mxu0 0.0
  %55 = vmatpush.msra.mxu0 0.0
  %56 = vmatpush.msra.mxu0 0.0
  %57 = vmatpush.msra.mxu0 0.0
  %58 = vmatpush.msra.mxu0 0.0
  %59 = vmatpush.msra.mxu0 %v37
  %60 = vmatpush.msra.mxu0 %v36
  %61 = vmatpush.msra.mxu0 %v35
  %62 = vmatpush.msra.mxu0 %v34
  %63 = vmatpush.msra.mxu0 %v33
  %64 = vmatpush.msra.mxu0 %v32
  %65 = vmatpush.msra.mxu0 %v31
  %66 = vmatpush.msra.mxu0 %v30
  %67 = vmatmul.f32.gmra.mxu0 %v40
  %v68 = vpop.f32.mrf.mxu0
  %v69 = vadd.f32 0.0, %v68
  %70 = vmatmul.f32.gmra.mxu0 %v43
  %v71 = vpop.f32.mrf.mxu0
  %v72 = vadd.f32 0.0, %v71
  %73 = vmatmul.f32.gmra.mxu0 %v46
  %v74 = vpop.f32.mrf.mxu0
  %v75 = vadd.f32 0.0, %v74
  %76 = vmatmul.f32.gmra.mxu0 %v49
  %v77 = vpop.f32.mrf.mxu0
  %v78 = vadd.f32 0.0, %v77
  %79 = vdwg.mxu0
  %v80 = vadd.f32 %v22, %v69
  %v81 = vadd.f32 %v23, %v72
  %v82 = vadd.f32 %v24, %v75
  %v83 = vadd.f32 %v25, %v78
  %84 = vst [vmem:[#allocation2] sm:$0xff] %v80
  %85 = vst [vmem:[#allocation2 + $0x8] sm:$0xff] %v81
  %86 = vst [vmem:[#allocation2 + $0x10] sm:$0xff] %v82
  %87 = vst [vmem:[#allocation2 + $0x18] sm:$0xff] %v83
  // Predicated region
  $region18: #{encoder_forward.13} parent=0 // pred_check
    %p88 = pneg %p14
  $region19: #{encoder_forward.13} parent=0 // pred_check_branch
    %90 = sbr.rel (%p88) target = $region21
  $region20: #{encoder_forward.13} parent=0 // pred_region
    %v91 = vld [vmem:[#allocation2] sm:$0xff]
    %v92 = vld [vmem:[#allocation2 + $0x8] sm:$0xff]
    %v93 = vld [vmem:[#allocation2 + $0x10] sm:$0xff]
    %v94 = vld [vmem:[#allocation2 + $0x18] sm:$0xff]
    %v95 = vld [vmem:[%s2] sm:$0x1]
    %v97 = vperm.slane %v95, 0
    %v99 = vadd.f32 %v91, %v97
    %v100 = vadd.f32 %v92, %v97
    %v101 = vadd.f32 %v93, %v97
    %v102 = vadd.f32 %v94, %v97
    %v103 = vmax.f32 %v99, 0.0
    %v104 = vmax.f32 %v100, 0.0
    %v105 = vmax.f32 %v101, 0.0
    %v106 = vmax.f32 %v102, 0.0
    %107 = vst [vmem:[%s3] sm:$0xff] %v103
    %108 = vst [vmem:[%s3 + $0x8] sm:$0xff] %v104
    %109 = vst [vmem:[%s3 + $0x10] sm:$0xff] %v105
    %110 = vst [vmem:[%s3 + $0x18] sm:$0xff] %v106
  $region21: #{encoder_forward.13} parent=0 // pred_fallthru
    _
  // Predicated region
  $region22: #{encoder_forward.13} parent=0 // pred_check
    _
  $region23: #{encoder_forward.13} parent=0 // pred_check_branch
    %112 = sbr.rel (0) target = $region25
  $region24: #{encoder_forward.13} parent=0 // pred_region
    _
  $region25: #{encoder_forward.13} parent=0 // pred_fallthru
    _
  // Predicated region
  $region26: #{encoder_forward.13} parent=0 // pred_check
    _
  $region27: #{encoder_forward.13} parent=0 // pred_check_branch
    %114 = sbr.rel (0) target = $region29
  $region28: #{encoder_forward.13} parent=0 // pred_region
    _
  $region29: #{encoder_forward.13} parent=0 // pred_fallthru
    _

// kernel: encoder_forward.10
$region0: #{encoder_forward.10}
  #allocation0 [shape = 'u32[]', space=smem, size = 0x4, offset = 0x4, fixed_abs, tag = 'smem constant byte address 0x4 - core index']
  #allocation1 [shape = 'u32[72,128]{1,0:T(1,128)}', space=vmem, size = 0x9000, scoped, tag = 'internal scratch']
  #allocation2 [shape = 'f32[32,192]{1,0:T(8,128)}', space=vmem, size = 0x8000, scoped, tag = 'scratch operand']
  %s0 = inlined_call_operand.vmem [shape: f32[32,64], index: 0, kind: input, shape index: {}]
  %s1 = inlined_call_operand.hbm [shape: f32[64,192], index: 1, kind: input, shape index: {}]
  %s2 = inlined_call_operand.vmem [shape: f32[1,192], index: 2, kind: input, shape index: {}]
  %s3 = inlined_call_operand.vmem [shape: f32[32,192], index: 3, kind: output, shape index: {}]
  %s4 = sld [smem:[#allocation0]]
  $region34: #{encoder_forward.10} parent=0
    _
  %s6 = ssub.s32 1, %s4
  %s7 = scalar_select 0, %s6, %s4
  $region1: #{encoder_forward.10} parent=0
    #allocation3 [shape = 'u8[65536]{0}', space=vmem, size = 0x10000, scoped, tag = 'input window, operand 1, single buffered']
    #allocation4 [shape = 's32[1]{0}', space=sflag, size = 0x4, scoped, tag = 'scoped memory for encoder_forward.10']
    %8 = vsyncpa [#allocation4], 0
    // Predicated region
    $region2: #{encoder_forward.10} parent=1 // pred_check
      _
    $region3: #{encoder_forward.10} parent=1 // pred_check_branch
      %10 = sbr.rel (0) target = $region5
    $region4: #{encoder_forward.10} parent=1 // pred_region
      _
    $region5: #{encoder_forward.10} parent=1 // pred_fallthru
      _
    // Predicated region
    $region6: #{encoder_forward.10} parent=1 // pred_check
      _
    $region7: #{encoder_forward.10} parent=1 // pred_check_branch
      %12 = sbr.rel (0) target = $region9
    $region8: #{encoder_forward.10} parent=1 // pred_region
      %14 = vsyncadd [#allocation4], 0
      %s15 = sshll.u32 %s1, 4
      %s16 = int_to_ptr.hbm [resolvable:$true] %s15
      %s17 = sshll.u32 [#allocation3], 4
      %s18 = int_to_ptr.vmem [resolvable:$true] %s17
      %23 = dma.hbm_to_vmem [thread:$0]  %s16, 2048, %s18, [#allocation4], 256, 256, 16
    $region9: #{encoder_forward.10} parent=1 // pred_fallthru
      _
    // Predicated region
    $region10: #{encoder_forward.10} parent=1 // pred_check
      _
    $region11: #{encoder_forward.10} parent=1 // pred_check_branch
      %25 = sbr.rel (0) target = $region13
    $region12: #{encoder_forward.10} parent=1 // pred_region
      _
    $region13: #{encoder_forward.10} parent=1 // pred_fallthru
      _
    // Predicated region
    $region14: #{encoder_forward.10} parent=1 // pred_check
      _
    $region15: #{encoder_forward.10} parent=1 // pred_check_branch
      %27 = sbr.rel (0) target = $region17
    $region16: #{encoder_forward.10} parent=1 // pred_region
      %29 = dma.done [#allocation4], 2048
    $region17: #{encoder_forward.10} parent=1 // pred_fallthru
      _
    %p30 = scmp.eq.s32.totalorder 0, 0
    // Predicated region
    $region18: #{encoder_forward.10} parent=1 // pred_check
      %p31 = pneg %p30
    $region19: #{encoder_forward.10} parent=1 // pred_check_branch
      %33 = sbr.rel (%p31) target = $region21
    $region20: #{encoder_forward.10} parent=1 // pred_region
      %34 = vst [vmem:[#allocation2] sm:$0xff] 0.0
      %vm35 = vcmask 523264
      %36 = vst.msk [vmem:[#allocation2 + $0x8] sm:$0xff] %vm35, 0.0
      %37 = vst [vmem:[#allocation2 + $0x10] sm:$0xff] 0.0
      %38 = vst.msk [vmem:[#allocation2 + $0x18] sm:$0xff] %vm35, 0.0
      %39 = vst [vmem:[#allocation2 + $0x20] sm:$0xff] 0.0
      %40 = vst.msk [vmem:[#allocation2 + $0x28] sm:$0xff] %vm35, 0.0
      %41 = vst [vmem:[#allocation2 + $0x30] sm:$0xff] 0.0
      %42 = vst.msk [vmem:[#allocation2 + $0x38] sm:$0xff] %vm35, 0.0
    $region21: #{encoder_forward.10} parent=1 // pred_fallthru
      _
    %v43 = vld [vmem:[#allocation2] sm:$0xff]
    %v44 = vld [vmem:[#allocation2 + $0x8] sm:$0xff]
    %v45 = vld [vmem:[#allocation2 + $0x10] sm:$0xff]
    %v46 = vld [vmem:[#allocation2 + $0x18] sm:$0xff]
    %v47 = vld [vmem:[#allocation2 + $0x20] sm:$0xff]
    %v48 = vld [vmem:[#allocation2 + $0x28] sm:$0xff]
    %v49 = vld [vmem:[#allocation2 + $0x30] sm:$0xff]
    %v50 = vld [vmem:[#allocation2 + $0x38] sm:$0xff]
    %v51 = vld [vmem:[%s0] sm:$0xff]
    %v52 = vld [vmem:[%s0 + $0x8] sm:$0xff]
    %v53 = vld [vmem:[%s0 + $0x10] sm:$0xff]
    %v54 = vld [vmem:[%s0 + $0x18] sm:$0xff]
    %v55 = vld [vmem:[#allocation3] sm:$0xff]
    %v56 = vld [vmem:[#allocation3 + $0x8] sm:$0xff]
    %v57 = vld [vmem:[#allocation3 + $0x10] sm:$0xff]
    %v58 = vld [vmem:[#allocation3 + $0x18] sm:$0xff]
    %v59 = vld [vmem:[#allocation3 + $0x20] sm:$0xff]
    %v60 = vld [vmem:[#allocation3 + $0x28] sm:$0xff]
    %v61 = vld [vmem:[#allocation3 + $0x30] sm:$0xff]
    %v62 = vld [vmem:[#allocation3 + $0x38] sm:$0xff]
    %v63 = vld [vmem:[#allocation3 + $0x40] sm:$0xff]
    %v64 = vld [vmem:[#allocation3 + $0x48] sm:$0xff]
    %v65 = vld [vmem:[#allocation3 + $0x50] sm:$0xff]
    %v66 = vld [vmem:[#allocation3 + $0x58] sm:$0xff]
    %v67 = vld [vmem:[#allocation3 + $0x60] sm:$0xff]
    %v68 = vld [vmem:[#allocation3 + $0x68] sm:$0xff]
    %v69 = vld [vmem:[#allocation3 + $0x70] sm:$0xff]
    %v70 = vld [vmem:[#allocation3 + $0x78] sm:$0xff]
    %vm71 = vcmask 523264
    %v73 = vsel %vm71, %v51, 0
    %v76 = vsel %vm71, %v52, 0
    %v79 = vsel %vm71, %v53, 0
    %v82 = vsel %vm71, %v54, 0
    %84 = vmatpush.msra.mxu0 0.0
    %85 = vmatpush.msra.mxu0 0.0
    %86 = vmatpush.msra.mxu0 0.0
    %87 = vmatpush.msra.mxu0 0.0
    %88 = vmatpush.msra.mxu0 0.0
    %89 = vmatpush.msra.mxu0 0.0
    %90 = vmatpush.msra.mxu0 0.0
    %91 = vmatpush.msra.mxu0 0.0
    %92 = vmatpush.msra.mxu0 %v69
    %93 = vmatpush.msra.mxu0 %v67
    %94 = vmatpush.msra.mxu0 %v65
    %95 = vmatpush.msra.mxu0 %v63
    %96 = vmatpush.msra.mxu0 %v61
    %97 = vmatpush.msra.mxu0 %v59
    %98 = vmatpush.msra.mxu0 %v57
    %99 = vmatpush.msra.mxu0 %v55
    %100 = vmatmul.f32.gmra.mxu0 %v73
    %v101 = vpop.f32.mrf.mxu0
    %v102 = vadd.f32 0.0, %v101
    %103 = vmatmul.f32.gmra.mxu0 %v76
    %v104 = vpop.f32.mrf.mxu0
    %v105 = vadd.f32 0.0, %v104
    %106 = vmatmul.f32.gmra.mxu0 %v79
    %v107 = vpop.f32.mrf.mxu0
    %v108 = vadd.f32 0.0, %v107
    %109 = vmatmul.f32.gmra.mxu0 %v82
    %v110 = vpop.f32.mrf.mxu0
    %v111 = vadd.f32 0.0, %v110
    %112 = vdwg.mxu0
    %113 = vmatpush.msra.mxu0 0.0
    %114 = vmatpush.msra.mxu0 0.0
    %115 = vmatpush.msra.mxu0 0.0
    %116 = vmatpush.msra.mxu0 0.0
    %117 = vmatpush.msra.mxu0 0.0
    %118 = vmatpush.msra.mxu0 0.0
    %119 = vmatpush.msra.mxu0 0.0
    %120 = vmatpush.msra.mxu0 0.0
    %121 = vmatpush.msra.mxu0 %v70
    %122 = vmatpush.msra.mxu0 %v68
    %123 = vmatpush.msra.mxu0 %v66
    %124 = vmatpush.msra.mxu0 %v64
    %125 = vmatpush.msra.mxu0 %v62
    %126 = vmatpush.msra.mxu0 %v60
    %127 = vmatpush.msra.mxu0 %v58
    %128 = vmatpush.msra.mxu0 %v56
    %129 = vmatmul.f32.gmra.mxu0 %v73
    %v130 = vpop.f32.mrf.mxu0
    %v131 = vadd.f32 0.0, %v130
    %132 = vmatmul.f32.gmra.mxu0 %v76
    %v133 = vpop.f32.mrf.mxu0
    %v134 = vadd.f32 0.0, %v133
    %135 = vmatmul.f32.gmra.mxu0 %v79
    %v136 = vpop.f32.mrf.mxu0
    %v137 = vadd.f32 0.0, %v136
    %138 = vmatmul.f32.gmra.mxu0 %v82
    %v139 = vpop.f32.mrf.mxu0
    %v140 = vadd.f32 0.0, %v139
    %141 = vdwg.mxu0
    %v142 = vadd.f32 %v43, %v102
    %v143 = vadd.f32 %v44, %v131
    %v144 = vadd.f32 %v45, %v105
    %v145 = vadd.f32 %v46, %v134
    %v146 = vadd.f32 %v47, %v108
    %v147 = vadd.f32 %v48, %v137
    %v148 = vadd.f32 %v49, %v111
    %v149 = vadd.f32 %v50, %v140
    %150 = vst [vmem:[#allocation2] sm:$0xff] %v142
    %151 = vst.msk [vmem:[#allocation2 + $0x8] sm:$0xff] %vm71, %v143
    %152 = vst [vmem:[#allocation2 + $0x10] sm:$0xff] %v144
    %153 = vst.msk [vmem:[#allocation2 + $0x18] sm:$0xff] %vm71, %v145
    %154 = vst [vmem:[#allocation2 + $0x20] sm:$0xff] %v146
    %155 = vst.msk [vmem:[#allocation2 + $0x28] sm:$0xff] %vm71, %v147
    %156 = vst [vmem:[#allocation2 + $0x30] sm:$0xff] %v148
    %157 = vst.msk [vmem:[#allocation2 + $0x38] sm:$0xff] %vm71, %v149
    // Predicated region
    $region22: #{encoder_forward.10} parent=1 // pred_check
      %p158 = pneg %p30
    $region23: #{encoder_forward.10} parent=1 // pred_check_branch
      %160 = sbr.rel (%p158) target = $region25
    $region24: #{encoder_forward.10} parent=1 // pred_region
      %v161 = vld [vmem:[#allocation2] sm:$0xff]
      %v162 = vld [vmem:[#allocation2 + $0x8] sm:$0xff]
      %v163 = vld [vmem:[#allocation2 + $0x10] sm:$0xff]
      %v164 = vld [vmem:[#allocation2 + $0x18] sm:$0xff]
      %v165 = vld [vmem:[#allocation2 + $0x20] sm:$0xff]
      %v166 = vld [vmem:[#allocation2 + $0x28] sm:$0xff]
      %v167 = vld [vmem:[#allocation2 + $0x30] sm:$0xff]
      %v168 = vld [vmem:[#allocation2 + $0x38] sm:$0xff]
      %v169 = vld [vmem:[%s2] sm:$0x3]
      %v171 = vperm.slane %v169, 0
      %v172 = vperm.slane %v169, 1
      %v175 = vadd.f32 %v161, %v171
      %v176 = vadd.f32 %v162, %v172
      %v177 = vadd.f32 %v163, %v171
      %v178 = vadd.f32 %v164, %v172
      %v179 = vadd.f32 %v165, %v171
      %v180 = vadd.f32 %v166, %v172
      %v181 = vadd.f32 %v167, %v171
      %v182 = vadd.f32 %v168, %v172
      %183 = vst [vmem:[%s3] sm:$0xff] %v175
      %184 = vst.msk [vmem:[%s3 + $0x8] sm:$0xff] %vm71, %v176
      %185 = vst [vmem:[%s3 + $0x10] sm:$0xff] %v177
      %186 = vst.msk [vmem:[%s3 + $0x18] sm:$0xff] %vm71, %v178
      %187 = vst [vmem:[%s3 + $0x20] sm:$0xff] %v179
      %188 = vst.msk [vmem:[%s3 + $0x28] sm:$0xff] %vm71, %v180
      %189 = vst [vmem:[%s3 + $0x30] sm:$0xff] %v181
      %190 = vst.msk [vmem:[%s3 + $0x38] sm:$0xff] %vm71, %v182
    $region25: #{encoder_forward.10} parent=1 // pred_fallthru
      _
    // Predicated region
    $region26: #{encoder_forward.10} parent=1 // pred_check
      _
    $region27: #{encoder_forward.10} parent=1 // pred_check_branch
      %192 = sbr.rel (0) target = $region29
    $region28: #{encoder_forward.10} parent=1 // pred_region
      _
    $region29: #{encoder_forward.10} parent=1 // pred_fallthru
      _
    // Predicated region
    $region30: #{encoder_forward.10} parent=1 // pred_check
      _
    $region31: #{encoder_forward.10} parent=1 // pred_check_branch
      %194 = sbr.rel (0) target = $region33
    $region32: #{encoder_forward.10} parent=1 // pred_region
      _
    $region33: #{encoder_forward.10} parent=1 // pred_fallthru
      _
    %195 = vsyncpa [#allocation4], 1

// kernel: encoder_forward.11
$region0: #{encoder_forward.11}
  #allocation0 [shape = 'u32[]', space=smem, size = 0x4, offset = 0x4, fixed_abs, tag = 'smem constant byte address 0x4 - core index']
  #allocation1 [shape = 'u32[72,128]{1,0:T(1,128)}', space=vmem, size = 0x9000, scoped, tag = 'internal scratch']
  %s0 = inlined_call_operand.vmem [shape: f32[2,12,16,16], index: 0, kind: input, shape index: {}, may-alias: {0,1,2}]
  %s1 = inlined_call_operand.vmem [shape: f32[2,12,16,16], index: 1, kind: input, shape index: {}, may-alias: {0,1,2}]
  %s2 = inlined_call_operand.vmem [shape: f32[2,12,16,16], index: 2, kind: input, shape index: {}, may-alias: {0,1,2}]
  %s3 = inlined_call_operand.vmem [shape: f32[2,4,16,16], index: 3, kind: output, shape index: {0}]
  %s4 = inlined_call_operand.hbm [shape: f32[2,4,16,16], index: 4, kind: output, shape index: {1}]
  %5 = xla_tuple %s3, %s4
  %s6 = sld [smem:[#allocation0]]
  $region53: #{encoder_forward.11} parent=0
    _
  %s8 = ssub.s32 1, %s6
  %s9 = scalar_select 0, %s8, %s6
  $region1: #{encoder_forward.11} parent=0
    #allocation2 [shape = 'u8[16384]{0}', space=vmem, size = 0x4000, scoped, tag = 'output window, operand 1']
    #allocation3 [shape = 's32[2]{0}', space=sflag, size = 0x8, scoped, tag = 'scoped memory for encoder_forward.11']
    %10 = vsyncpa [#allocation3], 0
    %s11 = scalar_lea.sflag [#allocation3], 1
    %12 = vsyncpa %s11, 0
    loop: start=0, step=1, limit=10
    $region2: #{encoder_forward.11} parent=1 // loop_pre_header
      _
    $region3: #{encoder_forward.11} parent=1 // loop_header
      %s14 = sphi 0, %s18
      %p15 = scmp.ge.s32.totalorder %s14, 10
      %s21 = sphi 0, %s33
      %s22 = sphi 0, %s29
      %s23 = sphi 0, %s21
      %s24 = sphi 0, %s22
      %s25 = sphi 0, %s23
      %s26 = sphi 0, %s24
      %s38 = sphi 0, %s40
      %s41 = sphi 0, %s38
      %s42 = sphi 0, %s41
      %s58 = sphi 0, %s42
      %s68 = sphi 0, %s70
      %s71 = sphi 0, %s68
      %s72 = sphi 0, %s71
      %s88 = sphi 0, %s72
      %s98 = sphi 0, %s100
      %s101 = sphi 0, %s98
      %s102 = sphi 0, %s101
      %s118 = sphi 0, %s102
      %s126 = sphi 0, %s128
      %s129 = sphi 0, %s126
      %s130 = sphi 0, %s129
      %s146 = sphi 0, %s130
      %s154 = sphi 0, %s156
      %s157 = sphi 0, %s154
      %s158 = sphi 0, %s157
      %s174 = sphi 0, %s158
    $region4: #{encoder_forward.11} parent=1 // loop_header_branch
      %17 = sbr.rel (%p15) target = $region8
    $region5: #{encoder_forward.11} parent=1 // loop_body
      %s19 = ssub.s32 %s14, 1
      %s20 = ssub.s32 %s14, 2
      %s27 = sadd.s32 1, %s22
      %p28 = scmp.ge.s32.totalorder %s27, 4
      %s29 = scalar_select %p28, 0, %s27
      %s30 = sadd.s32 1, %s21
      %s31 = scalar_select %p28, %s30, %s21
      %p32 = scmp.ge.s32.totalorder %s31, 2
      %s33 = scalar_select %p32, 0, %s31
      %s34 = ssub.s32 %s21, %s33
      %s35 = ssub.s32 %s22, %s29
      %s36 = sor.u32 %s34, %s35
      %p37 = scmp.eq.s32.totalorder %s36, 0
      %s39 = sadd.s32 %s38, 1
      %s40 = scalar_select %p37, %s38, %s39
      %p43 = pneg %p37
      %p44 = scmp.eq.s32.totalorder %s14, 7
      %p45 = por %p43, %p44
      %p46 = scmp.ne.s32.totalorder %s38, %s41
      %p47 = scmp.eq.s32.totalorder %s14, 0
      %p48 = por %p46, %p47
      %p49 = scmp.ne.s32.totalorder %s38, %s41
      %p50 = scmp.eq.s32.totalorder %s19, 7
      %p51 = por %p49, %p50
      %p52 = scmp.ne.s32.totalorder %s41, %s42
      %p53 = scmp.eq.s32.totalorder %s19, 0
      %p54 = por %p52, %p53
      %p55 = scmp.ne.s32.totalorder %s41, %s42
      %p56 = scmp.eq.s32.totalorder %s20, 7
      %p57 = por %p55, %p56
      %p59 = scmp.ne.s32.totalorder %s42, %s58
      %p60 = scmp.eq.s32.totalorder %s20, 0
      %p61 = por %p59, %p60
      %s62 = sadd.s32 %s22, 4
      %s63 = sadd.s32 %s29, 4
      %s64 = ssub.s32 %s21, %s33
      %s65 = ssub.s32 %s62, %s63
      %s66 = sor.u32 %s64, %s65
      %p67 = scmp.eq.s32.totalorder %s66, 0
      %s69 = sadd.s32 %s68, 1
      %s70 = scalar_select %p67, %s68, %s69
      %p73 = pneg %p67
      %p74 = scmp.eq.s32.totalorder %s14, 7
      %p75 = por %p73, %p74
      %p76 = scmp.ne.s32.totalorder %s68, %s71
      %p77 = scmp.eq.s32.totalorder %s14, 0
      %p78 = por %p76, %p77
      %p79 = scmp.ne.s32.totalorder %s68, %s71
      %p80 = scmp.eq.s32.totalorder %s19, 7
      %p81 = por %p79, %p80
      %p82 = scmp.ne.s32.totalorder %s71, %s72
      %p83 = scmp.eq.s32.totalorder %s19, 0
      %p84 = por %p82, %p83
      %p85 = scmp.ne.s32.totalorder %s71, %s72
      %p86 = scmp.eq.s32.totalorder %s20, 7
      %p87 = por %p85, %p86
      %p89 = scmp.ne.s32.totalorder %s72, %s88
      %p90 = scmp.eq.s32.totalorder %s20, 0
      %p91 = por %p89, %p90
      %s92 = sadd.s32 %s22, 8
      %s93 = sadd.s32 %s29, 8
      %s94 = ssub.s32 %s21, %s33
      %s95 = ssub.s32 %s92, %s93
      %s96 = sor.u32 %s94, %s95
      %p97 = scmp.eq.s32.totalorder %s96, 0
      %s99 = sadd.s32 %s98, 1
      %s100 = scalar_select %p97, %s98, %s99
      %p103 = pneg %p97
      %p104 = scmp.eq.s32.totalorder %s14, 7
      %p105 = por %p103, %p104
      %p106 = scmp.ne.s32.totalorder %s98, %s101
      %p107 = scmp.eq.s32.totalorder %s14, 0
      %p108 = por %p106, %p107
      %p109 = scmp.ne.s32.totalorder %s98, %s101
      %p110 = scmp.eq.s32.totalorder %s19, 7
      %p111 = por %p109, %p110
      %p112 = scmp.ne.s32.totalorder %s101, %s102
      %p113 = scmp.eq.s32.totalorder %s19, 0
      %p114 = por %p112, %p113
      %p115 = scmp.ne.s32.totalorder %s101, %s102
      %p116 = scmp.eq.s32.totalorder %s20, 7
      %p117 = por %p115, %p116
      %p119 = scmp.ne.s32.totalorder %s102, %s118
      %p120 = scmp.eq.s32.totalorder %s20, 0
      %p121 = por %p119, %p120
      %s122 = ssub.s32 %s21, %s33
      %s123 = ssub.s32 %s22, %s29
      %s124 = sor.u32 %s122, %s123
      %p125 = scmp.eq.s32.totalorder %s124, 0
      %s127 = sadd.s32 %s126, 1
      %s128 = scalar_select %p125, %s126, %s127
      %p131 = pneg %p125
      %p132 = scmp.eq.s32.totalorder %s14, 7
      %p133 = por %p131, %p132
      %p134 = scmp.ne.s32.totalorder %s126, %s129
      %p135 = scmp.eq.s32.totalorder %s14, 0
      %p136 = por %p134, %p135
      %p137 = scmp.ne.s32.totalorder %s126, %s129
      %p138 = scmp.eq.s32.totalorder %s19, 7
      %p139 = por %p137, %p138
      %p140 = scmp.ne.s32.totalorder %s129, %s130
      %p141 = scmp.eq.s32.totalorder %s19, 0
      %p142 = por %p140, %p141
      %p143 = scmp.ne.s32.totalorder %s129, %s130
      %p144 = scmp.eq.s32.totalorder %s20, 7
      %p145 = por %p143, %p144
      %p147 = scmp.ne.s32.totalorder %s130, %s146
      %p148 = scmp.eq.s32.totalorder %s20, 0
      %p149 = por %p147, %p148
      %s150 = ssub.s32 %s21, %s33
      %s151 = ssub.s32 %s22, %s29
      %s152 = sor.u32 %s150, %s151
      %p153 = scmp.eq.s32.totalorder %s152, 0
      %s155 = sadd.s32 %s154, 1
      %s156 = scalar_select %p153, %s154, %s155
      %p159 = pneg %p153
      %p160 = scmp.eq.s32.totalorder %s14, 7
      %p161 = por %p159, %p160
      %p162 = scmp.ne.s32.totalorder %s154, %s157
      %p163 = scmp.eq.s32.totalorder %s14, 0
      %p164 = por %p162, %p163
      %p165 = scmp.ne.s32.totalorder %s154, %s157
      %p166 = scmp.eq.s32.totalorder %s19, 7
      %p167 = por %p165, %p166
      %p168 = scmp.ne.s32.totalorder %s157, %s158
      %p169 = scmp.eq.s32.totalorder %s19, 0
      %p170 = por %p168, %p169
      %p171 = scmp.ne.s32.totalorder %s157, %s158
      %p172 = scmp.eq.s32.totalorder %s20, 7
      %p173 = por %p171, %p172
      %p175 = scmp.ne.s32.totalorder %s158, %s174
      %p176 = scmp.eq.s32.totalorder %s20, 0
      %p177 = por %p175, %p176
      %p178 = scmp.le.s32.totalorder 1, %s14
      %p179 = scmp.lt.s32.totalorder %s14, 9
      %p180 = pnand %p178, %p179
      %p181 = pneg %p180
      // Predicated region
      $region9: #{encoder_forward.11} parent=5 // pred_check
        _
      $region10: #{encoder_forward.11} parent=5 // pred_check_branch
        %183 = sbr.rel (%p180) target = $region12
      $region11: #{encoder_forward.11} parent=5 // pred_region
        %s184 = ssub.s32 %s14, 1
      $region12: #{encoder_forward.11} parent=5 // pred_fallthru
        _
      %p185 = scmp.lt.s32.totalorder %s14, 8
      // Predicated region
      $region13: #{encoder_forward.11} parent=5 // pred_check
        %p186 = pneg %p185
      $region14: #{encoder_forward.11} parent=5 // pred_check_branch
        %188 = sbr.rel (%p186) target = $region16
      $region15: #{encoder_forward.11} parent=5 // pred_region
        // Predicated region
        $region17: #{encoder_forward.11} parent=15 // pred_check
          %p189 = pneg %p48
        $region18: #{encoder_forward.11} parent=15 // pred_check_branch
          %191 = sbr.rel (%p189) target = $region20
        $region19: #{encoder_forward.11} parent=15 // pred_region
          %p192 = scmp.lt.s32.totalorder %s21, 1
          %s193 = scalar_select %p192, %s21, 1
          %p194 = scmp.lt.s32.totalorder %s22, 11
          %s195 = scalar_select %p194, %s22, 11
          %s196 = smul.addr %s195, 2
          %s197 = smul.addr %s193, 24
          %s198 = sadd.s32 %s196, %s197
          %s199 = smul.addr %s198, 8
          %s200 = scalar_lea.vmem %s0, %s199
        $region20: #{encoder_forward.11} parent=15 // pred_fallthru
          _
        // Predicated region
        $region21: #{encoder_forward.11} parent=15 // pred_check
          %p201 = pneg %p78
        $region22: #{encoder_forward.11} parent=15 // pred_check_branch
          %203 = sbr.rel (%p201) target = $region24
        $region23: #{encoder_forward.11} parent=15 // pred_region
          %s204 = sadd.s32 %s22, 4
          %p205 = scmp.lt.s32.totalorder %s21, 1
          %s206 = scalar_select %p205, %s21, 1
          %p207 = scmp.lt.s32.totalorder %s204, 11
          %s208 = scalar_select %p207, %s204, 11
          %s209 = smul.addr %s208, 2
          %s210 = smul.addr %s206, 24
          %s211 = sadd.s32 %s209, %s210
          %s212 = smul.addr %s211, 8
          %s213 = scalar_lea.vmem %s1, %s212
          %s214 = sadd.s32 %s22, 4
        $region24: #{encoder_forward.11} parent=15 // pred_fallthru
          _
        // Predicated region
        $region25: #{encoder_forward.11} parent=15 // pred_check
          %p215 = pneg %p108
        $region26: #{encoder_forward.11} parent=15 // pred_check_branch
          %217 = sbr.rel (%p215) target = $region28
        $region27: #{encoder_forward.11} parent=15 // pred_region
          %s218 = sadd.s32 %s22, 8
          %p219 = scmp.lt.s32.totalorder %s21, 1
          %s220 = scalar_select %p219, %s21, 1
          %p221 = scmp.lt.s32.totalorder %s218, 11
          %s222 = scalar_select %p221, %s218, 11
          %s223 = smul.addr %s222, 2
          %s224 = smul.addr %s220, 24
          %s225 = sadd.s32 %s223, %s224
          %s226 = smul.addr %s225, 8
          %s227 = scalar_lea.vmem %s2, %s226
          %s228 = sadd.s32 %s22, 8
        $region28: #{encoder_forward.11} parent=15 // pred_fallthru
          _
      $region16: #{encoder_forward.11} parent=5 // pred_fallthru
        _
      %p229 = scmp.le.s32.totalorder 1, %s14
      %p230 = scmp.lt.s32.totalorder %s14, 9
      %p231 = pnand %p229, %p230
      %p232 = pneg %p231
      // Predicated region
      $region29: #{encoder_forward.11} parent=5 // pred_check
        _
      $region30: #{encoder_forward.11} parent=5 // pred_check_branch
        %234 = sbr.rel (%p231) target = $region32
      $region31: #{encoder_forward.11} parent=5 // pred_region
        %s235 = ssub.s32 %s14, 1
        %p236 = scmp.lt.s32.totalorder %s23, 1
        %s237 = scalar_select %p236, %s23, 1
        %p238 = scmp.lt.s32.totalorder %s24, 11
        %s239 = scalar_select %p238, %s24, 11
        %s240 = smul.addr %s239, 2
        %s241 = smul.addr %s237, 24
        %s242 = sadd.s32 %s240, %s241
        %s243 = smul.addr %s242, 8
        %s244 = scalar_lea.vmem %s0, %s243
        %p245 = pneg %p54
        %p246 = pneg %p51
        %s247 = sadd.s32 %s24, 4
        %p248 = scmp.lt.s32.totalorder %s23, 1
        %s249 = scalar_select %p248, %s23, 1
        %p250 = scmp.lt.s32.totalorder %s247, 11
        %s251 = scalar_select %p250, %s247, 11
        %s252 = smul.addr %s251, 2
        %s253 = smul.addr %s249, 24
        %s254 = sadd.s32 %s252, %s253
        %s255 = smul.addr %s254, 8
        %s256 = scalar_lea.vmem %s1, %s255
        %p257 = pneg %p84
        %p258 = pneg %p81
        %s259 = sadd.s32 %s24, 8
        %p260 = scmp.lt.s32.totalorder %s23, 1
        %s261 = scalar_select %p260, %s23, 1
        %p262 = scmp.lt.s32.totalorder %s259, 11
        %s263 = scalar_select %p262, %s259, 11
        %s264 = smul.addr %s263, 2
        %s265 = smul.addr %s261, 24
        %s266 = sadd.s32 %s264, %s265
        %s267 = smul.addr %s266, 8
        %s268 = scalar_lea.vmem %s2, %s267
        %p269 = pneg %p114
        %p270 = pneg %p111
        %p271 = pneg %p142
        %p272 = pneg %p139
        %p273 = scmp.lt.s32.totalorder %s23, 1
        %s274 = scalar_select %p273, %s23, 1
        %p275 = scmp.lt.s32.totalorder %s24, 3
        %s276 = scalar_select %p275, %s24, 3
        %s277 = smul.addr %s276, 2
        %s278 = smul.addr %s274, 8
        %s279 = sadd.s32 %s277, %s278
        %s280 = smul.addr %s279, 8
        %s281 = scalar_lea.vmem %s3, %s280
        %p282 = pneg %p170
        %p283 = pneg %p167
        %s284 = sand.u32 %s157, 1
        %s285 = scalar_lea.sflag [#allocation3], %s284
        %s286 = sand.u32 %s157, 1
        %s287 = smul.addr %s286, 16
        %s288 = scalar_lea.vmem [#allocation2], %s287
        %p289 = scmp.lt.s32.totalorder %s23, 1
        %s290 = scalar_select %p289, %s23, 1
        %p291 = scmp.lt.s32.totalorder %s24, 11
        %s292 = scalar_select %p291, %s24, 11
        %s293 = smul.addr %s292, 2
        %s294 = smul.addr %s290, 24
        %s295 = sadd.s32 %s293, %s294
        %s296 = smul.addr %s295, 8
        %s297 = scalar_lea.vmem %s0, %s296
        %s298 = sadd.s32 %s24, 4
        %p299 = scmp.lt.s32.totalorder %s23, 1
        %s300 = scalar_select %p299, %s23, 1
        %p301 = scmp.lt.s32.totalorder %s298, 11
        %s302 = scalar_select %p301, %s298, 11
        %s303 = smul.addr %s302, 2
        %s304 = smul.addr %s300, 24
        %s305 = sadd.s32 %s303, %s304
        %s306 = smul.addr %s305, 8
        %s307 = scalar_lea.vmem %s1, %s306
        %s308 = sadd.s32 %s24, 4
        %s309 = sadd.s32 %s24, 8
        %p310 = scmp.lt.s32.totalorder %s23, 1
        %s311 = scalar_select %p310, %s23, 1
        %p312 = scmp.lt.s32.totalorder %s309, 11
        %s313 = scalar_select %p312, %s309, 11
        %s314 = smul.addr %s313, 2
        %s315 = smul.addr %s311, 24
        %s316 = sadd.s32 %s314, %s315
        %s317 = smul.addr %s316, 8
        %s318 = scalar_lea.vmem %s2, %s317
        %s319 = sadd.s32 %s24, 8
        %p320 = scmp.lt.s32.totalorder %s23, 1
        %s321 = scalar_select %p320, %s23, 1
        %p322 = scmp.lt.s32.totalorder %s24, 3
        %s323 = scalar_select %p322, %s24, 3
        %s324 = smul.addr %s323, 2
        %s325 = smul.addr %s321, 8
        %s326 = sadd.s32 %s324, %s325
        %s327 = smul.addr %s326, 8
        %s328 = scalar_lea.vmem %s3, %s327
        %v329 = vld [vmem:[%s297] sm:$0xff]
        %v330 = vld [vmem:[%s297 + $0x8] sm:$0xff]
        %v331 = vld [vmem:[%s307] sm:$0xff]
        %v332 = vld [vmem:[%s307 + $0x8] sm:$0xff]
        %v333 = vld [vmem:[%s318] sm:$0xff]
        %v334 = vld [vmem:[%s318 + $0x8] sm:$0xff]
        %vm335 = vcmask 130048
        %v337 = vsel %vm335, %v329, 0
        %v340 = vsel %vm335, %v330, 0
        %v343 = vsel %vm335, %v331, 0
        %v346 = vsel %vm335, %v332, 0
        %348 = vmatpush.xpose.msra.mxu0 0.0
        %349 = vmatpush.xpose.msra.mxu0 0.0
        %350 = vmatpush.xpose.msra.mxu0 0.0
        %351 = vmatpush.xpose.msra.mxu0 0.0
        %352 = vmatpush.xpose.msra.mxu0 0.0
        %353 = vmatpush.xpose.msra.mxu0 0.0
        %354 = vmatpush.xpose.msra.mxu0 0.0
        %355 = vmatpush.xpose.msra.mxu0 0.0
        %356 = vmatpush.xpose.msra.mxu0 0.0
        %357 = vmatpush.xpose.msra.mxu0 0.0
        %358 = vmatpush.xpose.msra.mxu0 0.0
        %359 = vmatpush.xpose.msra.mxu0 0.0
        %360 = vmatpush.xpose.msra.mxu0 0.0
        %361 = vmatpush.xpose.msra.mxu0 0.0
        %362 = vmatpush.xpose.msra.mxu0 %v346
        %363 = vmatpush.xpose.msra.mxu0 %v343
        %364 = vmatmul.f32.gmra.mxu0 %v337
        %v365 = vpop.f32.mrf.mxu0
        %v366 = vadd.f32 0.0, %v365
        %367 = vmatmul.f32.gmra.mxu0 %v340
        %v368 = vpop.f32.mrf.mxu0
        %v369 = vadd.f32 0.0, %v368
        %370 = vdwg.mxu0
        %v371 = vmul.f32 %v366, 0.25
        %v372 = vmul.f32 %v369, 0.25
        %v373 = vsel %vm335, %v371, -inf
        %374 = vmax.xlane.f32.xlu0 %v373
        %v375 = vpop.xlane.xlu0 %374
        %v376 = vsel %vm335, %v372, -inf
        %377 = vmax.xlane.f32.xlu0 %v376
        %v378 = vpop.xlane.xlu0 %377
        %v379 = vsub.f32 %v371, %v375
        %v380 = vsub.f32 %v372, %v378
        %v381 = vmul.f32 %v379, 1.442695
        %v382 = vpow.pop %v381
        %v383 = vmul.f32 %v380, 1.442695
        %v384 = vpow.pop %v383
        %v385 = vsel %vm335, %v382, 0.0
        %386 = vadd.xlane.f32.xlu0 %v385
        %v387 = vpop.xlane.xlu0 %386
        %v388 = vsel %vm335, %v384, 0.0
        %389 = vadd.xlane.f32.xlu0 %v388
        %v390 = vpop.xlane.xlu0 %389
        %v391 = vrcp.pop %v387
        %v392 = vrcp.pop %v390
        %v393 = vmul.f32 %v387, %v391
        %v394 = vmul.f32 %v390, %v392
        %v395 = vsub.f32 2.0, %v393
        %v396 = vsub.f32 2.0, %v394
        %v397 = vmul.f32 %v391, %v395
        %v398 = vmul.f32 %v392, %v396
        %v399 = vmul.f32 %v382, %v397
        %v400 = vmul.f32 %v384, %v398
        %v402 = vsel %vm335, %v399, 0
        %v405 = vsel %vm335, %v400, 0
        %407 = vmatpush.msra.mxu0 0.0
        %408 = vmatpush.msra.mxu0 0.0
        %409 = vmatpush.msra.mxu0 0.0
        %410 = vmatpush.msra.mxu0 0.0
        %411 = vmatpush.msra.mxu0 0.0
        %412 = vmatpush.msra.mxu0 0.0
        %413 = vmatpush.msra.mxu0 0.0
        %414 = vmatpush.msra.mxu0 0.0
        %415 = vmatpush.msra.mxu0 0.0
        %416 = vmatpush.msra.mxu0 0.0
        %417 = vmatpush.msra.mxu0 0.0
        %418 = vmatpush.msra.mxu0 0.0
        %419 = vmatpush.msra.mxu0 0.0
        %420 = vmatpush.msra.mxu0 0.0
        %421 = vmatpush.msra.mxu0 %v334
        %422 = vmatpush.msra.mxu0 %v333
        %423 = vmatmul.f32.gmra.mxu0 %v402
        %v424 = vpop.f32.mrf.mxu0
        %v425 = vadd.f32 0.0, %v424
        %426 = vmatmul.f32.gmra.mxu0 %v405
        %v427 = vpop.f32.mrf.mxu0
        %v428 = vadd.f32 0.0, %v427
        %429 = vdwg.mxu0
        %430 = vst.msk [vmem:[%s328] sm:$0xff] %vm335, %v425
        %431 = vst.msk [vmem:[%s328 + $0x8] sm:$0xff] %vm335, %v428
        %432 = vst.msk [vmem:[%s288] sm:$0xff] %vm335, %v399
        %433 = vst.msk [vmem:[%s288 + $0x8] sm:$0xff] %vm335, %v400
        %p434 = scmp.lt.s32.totalorder %s23, 1
        %s435 = scalar_select %p434, %s23, 1
        %p436 = scmp.lt.s32.totalorder %s24, 3
        %s437 = scalar_select %p436, %s24, 3
        %s438 = smul.addr %s437, 2
        %s439 = smul.addr %s435, 8
        %s440 = sadd.s32 %s438, %s439
        %s441 = smul.addr %s440, 8
        %s442 = scalar_lea.vmem %s3, %s441
        %s443 = sand.u32 %s157, 1
        %s444 = scalar_lea.sflag [#allocation3], %s443
        %s445 = sand.u32 %s157, 1
        %s446 = smul.addr %s445, 16
        %s447 = scalar_lea.vmem [#allocation2], %s446
        // Predicated region
        $region33: #{encoder_forward.11} parent=31 // pred_check
          %p448 = pneg %p139
        $region34: #{encoder_forward.11} parent=31 // pred_check_branch
          %450 = sbr.rel (%p448) target = $region36
        $region35: #{encoder_forward.11} parent=31 // pred_region
          _
        $region36: #{encoder_forward.11} parent=31 // pred_fallthru
          _
        // Predicated region
        $region37: #{encoder_forward.11} parent=31 // pred_check
          %p451 = pneg %p167
        $region38: #{encoder_forward.11} parent=31 // pred_check_branch
          %453 = sbr.rel (%p451) target = $region40
        $region39: #{encoder_forward.11} parent=31 // pred_region
          %455 = vsyncadd %s444, 0
          %s456 = smul.addr %s24, 2
          %s457 = smul.addr %s23, 8
          %s458 = sadd.s32 %s456, %s457
          %s459 = smul.addr %s458, 8
          %s460 = scalar_lea.hbm %s4, %s459
          %s461 = sshll.u32 %s447, 4
          %s462 = int_to_ptr.vmem [resolvable:$true] %s461
          %s463 = sshll.u32 %s460, 4
          %s464 = int_to_ptr.hbm [resolvable:$true] %s463
          %469 = dma.vmem_to_hbm [thread:$0]  %s462, 256, %s464, %s444, 128, 128, 8
        $region40: #{encoder_forward.11} parent=31 // pred_fallthru
          _
      $region32: #{encoder_forward.11} parent=5 // pred_fallthru
        _
      %p470 = scmp.le.s32.totalorder 2, %s14
      // Predicated region
      $region41: #{encoder_forward.11} parent=5 // pred_check
        %p471 = pneg %p470
      $region42: #{encoder_forward.11} parent=5 // pred_check_branch
        %473 = sbr.rel (%p471) target = $region44
      $region43: #{encoder_forward.11} parent=5 // pred_region
        %s474 = ssub.s32 %s14, 2
        // Predicated region
        $region45: #{encoder_forward.11} parent=43 // pred_check
          %p475 = pneg %p145
        $region46: #{encoder_forward.11} parent=43 // pred_check_branch
          %477 = sbr.rel (%p475) target = $region48
        $region47: #{encoder_forward.11} parent=43 // pred_region
          %p478 = scmp.lt.s32.totalorder %s25, 1
          %s479 = scalar_select %p478, %s25, 1
          %p480 = scmp.lt.s32.totalorder %s26, 3
          %s481 = scalar_select %p480, %s26, 3
          %s482 = smul.addr %s481, 2
          %s483 = smul.addr %s479, 8
          %s484 = sadd.s32 %s482, %s483
          %s485 = smul.addr %s484, 8
          %s486 = scalar_lea.vmem %s3, %s485
        $region48: #{encoder_forward.11} parent=43 // pred_fallthru
          _
        // Predicated region
        $region49: #{encoder_forward.11} parent=43 // pred_check
          %p487 = pneg %p173
        $region50: #{encoder_forward.11} parent=43 // pred_check_branch
          %489 = sbr.rel (%p487) target = $region52
        $region51: #{encoder_forward.11} parent=43 // pred_region
          %s490 = sand.u32 %s158, 1
          %s491 = scalar_lea.sflag [#allocation3], %s490
          %s492 = sand.u32 %s158, 1
          %s493 = smul.addr %s492, 16
          %s494 = scalar_lea.vmem [#allocation2], %s493
          %496 = dma.done %s491, 256
        $region52: #{encoder_forward.11} parent=43 // pred_fallthru
          _
      $region44: #{encoder_forward.11} parent=5 // pred_fallthru
        _
    $region6: #{encoder_forward.11} parent=1 // loop_footer
      %s18 = sadd.s32 1, %s14
    $region7: #{encoder_forward.11} parent=1 // loop_footer_branch
      %13 = sbr.rel target = $region3
    $region8: #{encoder_forward.11} parent=1 // loop_exit
      _
    %497 = vsyncpa [#allocation3], 1
    %s498 = scalar_lea.sflag [#allocation3], 1
    %499 = vsyncpa %s498, 1

// kernel: encoder_forward.12
$region0: #{encoder_forward.12}
  #allocation0 [shape = 'u32[]', space=smem, size = 0x4, offset = 0x4, fixed_abs, tag = 'smem constant byte address 0x4 - core index']
  #allocation1 [shape = 'u32[72,128]{1,0:T(1,128)}', space=vmem, size = 0x9000, scoped, tag = 'internal scratch']
  #allocation2 [shape = 'f32[32,64]{1,0:T(8,128)}', space=vmem, size = 0x4000, scoped, tag = 'scratch operand']
  %s0 = inlined_call_operand.vmem [shape: f32[32,64], index: 0, kind: input, shape index: {}]
  %s1 = inlined_call_operand.vmem [shape: f32[64,64], index: 1, kind: input, shape index: {}]
  %s2 = inlined_call_operand.vmem [shape: f32[1,64], index: 2, kind: input, shape index: {}]
  %s3 = inlined_call_operand.vmem [shape: f32[32,64], index: 3, kind: input, shape index: {}]
  %s4 = inlined_call_operand.vmem [shape: f32[32,64], index: 4, kind: output, shape index: {}]
  %s5 = sld [smem:[#allocation0]]
  $region34: #{encoder_forward.12} parent=0
    _
  %s7 = ssub.s32 1, %s5
  %s8 = scalar_select 0, %s7, %s5
  // Predicated region
  $region2: #{encoder_forward.12} parent=0 // pred_check
    _
  $region3: #{encoder_forward.12} parent=0 // pred_check_branch
    %10 = sbr.rel (0) target = $region5
  $region4: #{encoder_forward.12} parent=0 // pred_region
    _
  $region5: #{encoder_forward.12} parent=0 // pred_fallthru
    _
  // Predicated region
  $region6: #{encoder_forward.12} parent=0 // pred_check
    _
  $region7: #{encoder_forward.12} parent=0 // pred_check_branch
    %12 = sbr.rel (0) target = $region9
  $region8: #{encoder_forward.12} parent=0 // pred_region
    _
  $region9: #{encoder_forward.12} parent=0 // pred_fallthru
    _
  // Predicated region
  $region10: #{encoder_forward.12} parent=0 // pred_check
    _
  $region11: #{encoder_forward.12} parent=0 // pred_check_branch
    %14 = sbr.rel (0) target = $region13
  $region12: #{encoder_forward.12} parent=0 // pred_region
    _
  $region13: #{encoder_forward.12} parent=0 // pred_fallthru
    _
  // Predicated region
  $region14: #{encoder_forward.12} parent=0 // pred_check
    _
  $region15: #{encoder_forward.12} parent=0 // pred_check_branch
    %16 = sbr.rel (0) target = $region17
  $region16: #{encoder_forward.12} parent=0 // pred_region
    _
  $region17: #{encoder_forward.12} parent=0 // pred_fallthru
    _
  %p17 = scmp.eq.s32.totalorder 0, 0
  // Predicated region
  $region18: #{encoder_forward.12} parent=0 // pred_check
    %p18 = pneg %p17
  $region19: #{encoder_forward.12} parent=0 // pred_check_branch
    %20 = sbr.rel (%p18) target = $region21
  $region20: #{encoder_forward.12} parent=0 // pred_region
    %vm21 = vcmask 523264
    %22 = vst.msk [vmem:[#allocation2] sm:$0xff] %vm21, 0.0
    %23 = vst.msk [vmem:[#allocation2 + $0x8] sm:$0xff] %vm21, 0.0
    %24 = vst.msk [vmem:[#allocation2 + $0x10] sm:$0xff] %vm21, 0.0
    %25 = vst.msk [vmem:[#allocation2 + $0x18] sm:$0xff] %vm21, 0.0
  $region21: #{encoder_forward.12} parent=0 // pred_fallthru
    _
  %v26 = vld [vmem:[#allocation2] sm:$0xff]
  %v27 = vld [vmem:[#allocation2 + $0x8] sm:$0xff]
  %v28 = vld [vmem:[#allocation2 + $0x10] sm:$0xff]
  %v29 = vld [vmem:[#allocation2 + $0x18] sm:$0xff]
  %v30 = vld [vmem:[%s0] sm:$0xff]
  %v31 = vld [vmem:[%s0 + $0x8] sm:$0xff]
  %v32 = vld [vmem:[%s0 + $0x10] sm:$0xff]
  %v33 = vld [vmem:[%s0 + $0x18] sm:$0xff]
  %v34 = vld [vmem:[%s1] sm:$0xff]
  %v35 = vld [vmem:[%s1 + $0x8] sm:$0xff]
  %v36 = vld [vmem:[%s1 + $0x10] sm:$0xff]
  %v37 = vld [vmem:[%s1 + $0x18] sm:$0xff]
  %v38 = vld [vmem:[%s1 + $0x20] sm:$0xff]
  %v39 = vld [vmem:[%s1 + $0x28] sm:$0xff]
  %v40 = vld [vmem:[%s1 + $0x30] sm:$0xff]
  %v41 = vld [vmem:[%s1 + $0x38] sm:$0xff]
  %vm42 = vcmask 523264
  %v44 = vsel %vm42, %v30, 0
  %v47 = vsel %vm42, %v31, 0
  %v50 = vsel %vm42, %v32, 0
  %v53 = vsel %vm42, %v33, 0
  %55 = vmatpush.msra.mxu0 0.0
  %56 = vmatpush.msra.mxu0 0.0
  %57 = vmatpush.msra.mxu0 0.0
  %58 = vmatpush.msra.mxu0 0.0
  %59 = vmatpush.msra.mxu0 0.0
  %60 = vmatpush.msra.mxu0 0.0
  %61 = vmatpush.msra.mxu0 0.0
  %62 = vmatpush.msra.mxu0 0.0
  %63 = vmatpush.msra.mxu0 %v41
  %64 = vmatpush.msra.mxu0 %v40
  %65 = vmatpush.msra.mxu0 %v39
  %66 = vmatpush.msra.mxu0 %v38
  %67 = vmatpush.msra.mxu0 %v37
  %68 = vmatpush.msra.mxu0 %v36
  %69 = vmatpush.msra.mxu0 %v35
  %70 = vmatpush.msra.mxu0 %v34
  %71 = vmatmul.f32.gmra.mxu0 %v44
  %v72 = vpop.f32.mrf.mxu0
  %v73 = vadd.f32 0.0, %v72
  %74 = vmatmul.f32.gmra.mxu0 %v47
  %v75 = vpop.f32.mrf.mxu0
  %v76 = vadd.f32 0.0, %v75
  %77 = vmatmul.f32.gmra.mxu0 %v50
  %v78 = vpop.f32.mrf.mxu0
  %v79 = vadd.f32 0.0, %v78
  %80 = vmatmul.f32.gmra.mxu0 %v53
  %v81 = vpop.f32.mrf.mxu0
  %v82 = vadd.f32 0.0, %v81
  %83 = vdwg.mxu0
  %v84 = vadd.f32 %v26, %v73
  %v85 = vadd.f32 %v27, %v76
  %v86 = vadd.f32 %v28, %v79
  %v87 = vadd.f32 %v29, %v82
  %88 = vst.msk [vmem:[#allocation2] sm:$0xff] %vm42, %v84
  %89 = vst.msk [vmem:[#allocation2 + $0x8] sm:$0xff] %vm42, %v85
  %90 = vst.msk [vmem:[#allocation2 + $0x10] sm:$0xff] %vm42, %v86
  %91 = vst.msk [vmem:[#allocation2 + $0x18] sm:$0xff] %vm42, %v87
  // Predicated region
  $region22: #{encoder_forward.12} parent=0 // pred_check
    %p92 = pneg %p17
  $region23: #{encoder_forward.12} parent=0 // pred_check_branch
    %94 = sbr.rel (%p92) target = $region25
  $region24: #{encoder_forward.12} parent=0 // pred_region
    %v95 = vld [vmem:[#allocation2] sm:$0xff]
    %v96 = vld [vmem:[#allocation2 + $0x8] sm:$0xff]
    %v97 = vld [vmem:[#allocation2 + $0x10] sm:$0xff]
    %v98 = vld [vmem:[#allocation2 + $0x18] sm:$0xff]
    %v99 = vld [vmem:[%s2] sm:$0x1]
    %v101 = vperm.slane %v99, 0
    %v103 = vadd.f32 %v95, %v101
    %v104 = vadd.f32 %v96, %v101
    %v105 = vadd.f32 %v97, %v101
    %v106 = vadd.f32 %v98, %v101
    %v107 = vld [vmem:[%s3] sm:$0xff]
    %v108 = vld [vmem:[%s3 + $0x8] sm:$0xff]
    %v109 = vld [vmem:[%s3 + $0x10] sm:$0xff]
    %v110 = vld [vmem:[%s3 + $0x18] sm:$0xff]
    %v111 = vadd.f32 %v103, %v107
    %v112 = vadd.f32 %v104, %v108
    %v113 = vadd.f32 %v105, %v109
    %v114 = vadd.f32 %v106, %v110
    %v115 = vsel %vm42, %v111, 0.0
    %116 = vadd.xlane.f32.xlu0 %v115
    %v117 = vpop.xlane.xlu0 %116
    %v118 = vsel %vm42, %v112, 0.0
    %119 = vadd.xlane.f32.xlu0 %v118
    %v120 = vpop.xlane.xlu0 %119
    %v121 = vsel %vm42, %v113, 0.0
    %122 = vadd.xlane.f32.xlu0 %v121
    %v123 = vpop.xlane.xlu0 %122
    %v124 = vsel %vm42, %v114, 0.0
    %125 = vadd.xlane.f32.xlu0 %v124
    %v126 = vpop.xlane.xlu0 %125
    %v127 = vrcp.pop 64.0
    %v128 = vmul.f32 64.0, %v127
    %v129 = vsub.f32 1.0, %v128
    %v130 = vmul.f32 %v127, %v129
    %v131 = vadd.f32 %v127, %v130
    %vm132 = vweird.f32 %v127
    %v133 = vsel %vm132, %v127, %v131
    %v134 = vmul.f32 %v117, %v133
    %v135 = vmul.f32 %v120, %v133
    %v136 = vmul.f32 %v123, %v133
    %v137 = vmul.f32 %v126, %v133
    %v138 = vsub.f32 %v111, %v134
    %v139 = vsub.f32 %v112, %v135
    %v140 = vsub.f32 %v113, %v136
    %v141 = vsub.f32 %v114, %v137
    %v142 = vmul.f32 %v138, %v138
    %v143 = vmul.f32 %v139, %v139
    %v144 = vmul.f32 %v140, %v140
    %v145 = vmul.f32 %v141, %v141
    %v146 = vsel %vm42, %v142, 0.0
    %147 = vadd.xlane.f32.xlu0 %v146
    %v148 = vpop.xlane.xlu0 %147
    %v149 = vsel %vm42, %v143, 0.0
    %150 = vadd.xlane.f32.xlu0 %v149
    %v151 = vpop.xlane.xlu0 %150
    %v152 = vsel %vm42, %v144, 0.0
    %153 = vadd.xlane.f32.xlu0 %v152
    %v154 = vpop.xlane.xlu0 %153
    %v155 = vsel %vm42, %v145, 0.0
    %156 = vadd.xlane.f32.xlu0 %v155
    %v157 = vpop.xlane.xlu0 %156
    %v158 = vmul.f32 %v148, %v133
    %v159 = vmul.f32 %v151, %v133
    %v160 = vmul.f32 %v154, %v133
    %v161 = vmul.f32 %v157, %v133
    %v162 = vadd.f32 %v158, 1e-05
    %v163 = vadd.f32 %v159, 1e-05
    %v164 = vadd.f32 %v160, 1e-05
    %v165 = vadd.f32 %v161, 1e-05
    %v166 = vrsqrt.pop %v162
    %v167 = vmul.f32 %v166, %v162
    %v168 = vmul.f32 %v167, %v166
    %v169 = vmul.f32 0.5, %v168
    %v170 = vsub.f32 1.5, %v169
    %v171 = vmul.f32 %v166, %v170
    %vm172 = vweird.f32 %v162
    %vm173 = vweird.f32 %v166
    %vm174 = vmor %vm172, %vm173
    %v175 = vsel %vm174, %v166, %v171
    %v176 = vrsqrt.pop %v163
    %v177 = vmul.f32 %v176, %v163
    %v178 = vmul.f32 %v177, %v176
    %v179 = vmul.f32 0.5, %v178
    %v180 = vsub.f32 1.5, %v179
    %v181 = vmul.f32 %v176, %v180
    %vm182 = vweird.f32 %v163
    %vm183 = vweird.f32 %v176
    %vm184 = vmor %vm182, %vm183
    %v185 = vsel %vm184, %v176, %v181
    %v186 = vrsqrt.pop %v164
    %v187 = vmul.f32 %v186, %v164
    %v188 = vmul.f32 %v187, %v186
    %v189 = vmul.f32 0.5, %v188
    %v190 = vsub.f32 1.5, %v189
    %v191 = vmul.f32 %v186, %v190
    %vm192 = vweird.f32 %v164
    %vm193 = vweird.f32 %v186
    %vm194 = vmor %vm192, %vm193
    %v195 = vsel %vm194, %v186, %v191
    %v196 = vrsqrt.pop %v165
    %v197 = vmul.f32 %v196, %v165
    %v198 = vmul.f32 %v197, %v196
    %v199 = vmul.f32 0.5, %v198
    %v200 = vsub.f32 1.5, %v199
    %v201 = vmul.f32 %v196, %v200
    %vm202 = vweird.f32 %v165
    %vm203 = vweird.f32 %v196
    %vm204 = vmor %vm202, %vm203
    %v205 = vsel %vm204, %v196, %v201
    %v206 = vmul.f32 %v138, %v175
    %v207 = vmul.f32 %v139, %v185
    %v208 = vmul.f32 %v140, %v195
    %v209 = vmul.f32 %v141, %v205
    %210 = vst.msk [vmem:[%s4] sm:$0xff] %vm42, %v206
    %211 = vst.msk [vmem:[%s4 + $0x8] sm:$0xff] %vm42, %v207
    %212 = vst.msk [vmem:[%s4 + $0x10] sm:$0xff] %vm42, %v208
    %213 = vst.msk [vmem:[%s4 + $0x18] sm:$0xff] %vm42, %v209
  $region25: #{encoder_forward.12} parent=0 // pred_fallthru
    _
  // Predicated region
  $region26: #{encoder_forward.12} parent=0 // pred_check
    _
  $region27: #{encoder_forward.12} parent=0 // pred_check_branch
    %215 = sbr.rel (0) target = $region29
  $region28: #{encoder_forward.12} parent=0 // pred_region
    _
  $region29: #{encoder_forward.12} parent=0 // pred_fallthru
    _
  // Predicated region
  $region30: #{encoder_forward.12} parent=0 // pred_check
    _
  $region31: #{encoder_forward.12} parent=0 // pred_check_branch
    %217 = sbr.rel (0) target = $region33
  $region32: #{encoder_forward.12} parent=0 // pred_region
    _
  $region33: #{encoder_forward.12} parent=0 // pred_fallthru
    _

// kernel: encoder_forward.15
$region0: #{encoder_forward.15}
  #allocation0 [shape = 'u32[]', space=smem, size = 0x4, offset = 0x4, fixed_abs, tag = 'smem constant byte address 0x4 - core index']
  #allocation1 [shape = 'u32[72,128]{1,0:T(1,128)}', space=vmem, size = 0x9000, scoped, tag = 'internal scratch']
  #allocation2 [shape = 'f32[32,192]{1,0:T(8,128)}', space=vmem, size = 0x8000, scoped, tag = 'scratch operand']
  %s0 = inlined_call_operand.vmem [shape: f32[32,64], index: 0, kind: input, shape index: {}]
  %s1 = inlined_call_operand.vmem [shape: f32[64,192], index: 1, kind: input, shape index: {}]
  %s2 = inlined_call_operand.vmem [shape: f32[1,192], index: 2, kind: input, shape index: {}]
  %s3 = inlined_call_operand.vmem [shape: f32[32,192], index: 3, kind: output, shape index: {}]
  %s4 = sld [smem:[#allocation0]]
  $region30: #{encoder_forward.15} parent=0
    _
  %s6 = ssub.s32 1, %s4
  %s7 = scalar_select 0, %s6, %s4
  // Predicated region
  $region2: #{encoder_forward.15} parent=0 // pred_check
    _
  $region3: #{encoder_forward.15} parent=0 // pred_check_branch
    %9 = sbr.rel (0) target = $region5
  $region4: #{encoder_forward.15} parent=0 // pred_region
    _
  $region5: #{encoder_forward.15} parent=0 // pred_fallthru
    _
  // Predicated region
  $region6: #{encoder_forward.15} parent=0 // pred_check
    _
  $region7: #{encoder_forward.15} parent=0 // pred_check_branch
    %11 = sbr.rel (0) target = $region9
  $region8: #{encoder_forward.15} parent=0 // pred_region
    _
  $region9: #{encoder_forward.15} parent=0 // pred_fallthru
    _
  // Predicated region
  $region10: #{encoder_forward.15} parent=0 // pred_check
    _
  $region11: #{encoder_forward.15} parent=0 // pred_check_branch
    %13 = sbr.rel (0) target = $region13
  $region12: #{encoder_forward.15} parent=0 // pred_region
    _
  $region13: #{encoder_forward.15} parent=0 // pred_fallthru
    _
  %p14 = scmp.eq.s32.totalorder 0, 0
  // Predicated region
  $region14: #{encoder_forward.15} parent=0 // pred_check
    %p15 = pneg %p14
  $region15: #{encoder_forward.15} parent=0 // pred_check_branch
    %17 = sbr.rel (%p15) target = $region17
  $region16: #{encoder_forward.15} parent=0 // pred_region
    %18 = vst [vmem:[#allocation2] sm:$0xff] 0.0
    %vm19 = vcmask 523264
    %20 = vst.msk [vmem:[#allocation2 + $0x8] sm:$0xff] %vm19, 0.0
    %21 = vst [vmem:[#allocation2 + $0x10] sm:$0xff] 0.0
    %22 = vst.msk [vmem:[#allocation2 + $0x18] sm:$0xff] %vm19, 0.0
    %23 = vst [vmem:[#allocation2 + $0x20] sm:$0xff] 0.0
    %24 = vst.msk [vmem:[#allocation2 + $0x28] sm:$0xff] %vm19, 0.0
    %25 = vst [vmem:[#allocation2 + $0x30] sm:$0xff] 0.0
    %26 = vst.msk [vmem:[#allocation2 + $0x38] sm:$0xff] %vm19, 0.0
  $region17: #{encoder_forward.15} parent=0 // pred_fallthru
    _
  %v27 = vld [vmem:[#allocation2] sm:$0xff]
  %v28 = vld [vmem:[#allocation2 + $0x8] sm:$0xff]
  %v29 = vld [vmem:[#allocation2 + $0x10] sm:$0xff]
  %v30 = vld [vmem:[#allocation2 + $0x18] sm:$0xff]
  %v31 = vld [vmem:[#allocation2 + $0x20] sm:$0xff]
  %v32 = vld [vmem:[#allocation2 + $0x28] sm:$0xff]
  %v33 = vld [vmem:[#allocation2 + $0x30] sm:$0xff]
  %v34 = vld [vmem:[#allocation2 + $0x38] sm:$0xff]
  %v35 = vld [vmem:[%s0] sm:$0xff]
  %v36 = vld [vmem:[%s0 + $0x8] sm:$0xff]
  %v37 = vld [vmem:[%s0 + $0x10] sm:$0xff]
  %v38 = vld [vmem:[%s0 + $0x18] sm:$0xff]
  %v39 = vld [vmem:[%s1] sm:$0xff]
  %v40 = vld [vmem:[%s1 + $0x8] sm:$0xff]
  %v41 = vld [vmem:[%s1 + $0x10] sm:$0xff]
  %v42 = vld [vmem:[%s1 + $0x18] sm:$0xff]
  %v43 = vld [vmem:[%s1 + $0x20] sm:$0xff]
  %v44 = vld [vmem:[%s1 + $0x28] sm:$0xff]
  %v45 = vld [vmem:[%s1 + $0x30] sm:$0xff]
  %v46 = vld [vmem:[%s1 + $0x38] sm:$0xff]
  %v47 = vld [vmem:[%s1 + $0x40] sm:$0xff]
  %v48 = vld [vmem:[%s1 + $0x48] sm:$0xff]
  %v49 = vld [vmem:[%s1 + $0x50] sm:$0xff]
  %v50 = vld [vmem:[%s1 + $0x58] sm:$0xff]
  %v51 = vld [vmem:[%s1 + $0x60] sm:$0xff]
  %v52 = vld [vmem:[%s1 + $0x68] sm:$0xff]
  %v53 = vld [vmem:[%s1 + $0x70] sm:$0xff]
  %v54 = vld [vmem:[%s1 + $0x78] sm:$0xff]
  %vm55 = vcmask 523264
  %v57 = vsel %vm55, %v35, 0
  %v60 = vsel %vm55, %v36, 0
  %v63 = vsel %vm55, %v37, 0
  %v66 = vsel %vm55, %v38, 0
  %68 = vmatpush.msra.mxu0 0.0
  %69 = vmatpush.msra.mxu0 0.0
  %70 = vmatpush.msra.mxu0 0.0
  %71 = vmatpush.msra.mxu0 0.0
  %72 = vmatpush.msra.mxu0 0.0
  %73 = vmatpush.msra.mxu0 0.0
  %74 = vmatpush.msra.mxu0 0.0
  %75 = vmatpush.msra.mxu0 0.0
  %76 = vmatpush.msra.mxu0 %v53
  %77 = vmatpush.msra.mxu0 %v51
  %78 = vmatpush.msra.mxu0 %v49
  %79 = vmatpush.msra.mxu0 %v47
  %80 = vmatpush.msra.mxu0 %v45
  %81 = vmatpush.msra.mxu0 %v43
  %82 = vmatpush.msra.mxu0 %v41
  %83 = vmatpush.msra.mxu0 %v39
  %84 = vmatmul.f32.gmra.mxu0 %v57
  %v85 = vpop.f32.mrf.mxu0
  %v86 = vadd.f32 0.0, %v85
  %87 = vmatmul.f32.gmra.mxu0 %v60
  %v88 = vpop.f32.mrf.mxu0
  %v89 = vadd.f32 0.0, %v88
  %90 = vmatmul.f32.gmra.mxu0 %v63
  %v91 = vpop.f32.mrf.mxu0
  %v92 = vadd.f32 0.0, %v91
  %93 = vmatmul.f32.gmra.mxu0 %v66
  %v94 = vpop.f32.mrf.mxu0
  %v95 = vadd.f32 0.0, %v94
  %96 = vdwg.mxu0
  %97 = vmatpush.msra.mxu0 0.0
  %98 = vmatpush.msra.mxu0 0.0
  %99 = vmatpush.msra.mxu0 0.0
  %100 = vmatpush.msra.mxu0 0.0
  %101 = vmatpush.msra.mxu0 0.0
  %102 = vmatpush.msra.mxu0 0.0
  %103 = vmatpush.msra.mxu0 0.0
  %104 = vmatpush.msra.mxu0 0.0
  %105 = vmatpush.msra.mxu0 %v54
  %106 = vmatpush.msra.mxu0 %v52
  %107 = vmatpush.msra.mxu0 %v50
  %108 = vmatpush.msra.mxu0 %v48
  %109 = vmatpush.msra.mxu0 %v46
  %110 = vmatpush.msra.mxu0 %v44
  %111 = vmatpush.msra.mxu0 %v42
  %112 = vmatpush.msra.mxu0 %v40
  %113 = vmatmul.f32.gmra.mxu0 %v57
  %v114 = vpop.f32.mrf.mxu0
  %v115 = vadd.f32 0.0, %v114
  %116 = vmatmul.f32.gmra.mxu0 %v60
  %v117 = vpop.f32.mrf.mxu0
  %v118 = vadd.f32 0.0, %v117
  %119 = vmatmul.f32.gmra.mxu0 %v63
  %v120 = vpop.f32.mrf.mxu0
  %v121 = vadd.f32 0.0, %v120
  %122 = vmatmul.f32.gmra.mxu0 %v66
  %v123 = vpop.f32.mrf.mxu0
  %v124 = vadd.f32 0.0, %v123
  %125 = vdwg.mxu0
  %v126 = vadd.f32 %v27, %v86
  %v127 = vadd.f32 %v28, %v115
  %v128 = vadd.f32 %v29, %v89
  %v129 = vadd.f32 %v30, %v118
  %v130 = vadd.f32 %v31, %v92
  %v131 = vadd.f32 %v32, %v121
  %v132 = vadd.f32 %v33, %v95
  %v133 = vadd.f32 %v34, %v124
  %134 = vst [vmem:[#allocation2] sm:$0xff] %v126
  %135 = vst.msk [vmem:[#allocation2 + $0x8] sm:$0xff] %vm55, %v127
  %136 = vst [vmem:[#allocation2 + $0x10] sm:$0xff] %v128
  %137 = vst.msk [vmem:[#allocation2 + $0x18] sm:$0xff] %vm55, %v129
  %138 = vst [vmem:[#allocation2 + $0x20] sm:$0xff] %v130
  %139 = vst.msk [vmem:[#allocation2 + $0x28] sm:$0xff] %vm55, %v131
  %140 = vst [vmem:[#allocation2 + $0x30] sm:$0xff] %v132
  %141 = vst.msk [vmem:[#allocation2 + $0x38] sm:$0xff] %vm55, %v133
  // Predicated region
  $region18: #{encoder_forward.15} parent=0 // pred_check
    %p142 = pneg %p14
  $region19: #{encoder_forward.15} parent=0 // pred_check_branch
    %144 = sbr.rel (%p142) target = $region21
  $region20: #{encoder_forward.15} parent=0 // pred_region
    %v145 = vld [vmem:[#allocation2] sm:$0xff]
    %v146 = vld [vmem:[#allocation2 + $0x8] sm:$0xff]
    %v147 = vld [vmem:[#allocation2 + $0x10] sm:$0xff]
    %v148 = vld [vmem:[#allocation2 + $0x18] sm:$0xff]
    %v149 = vld [vmem:[#allocation2 + $0x20] sm:$0xff]
    %v150 = vld [vmem:[#allocation2 + $0x28] sm:$0xff]
    %v151 = vld [vmem:[#allocation2 + $0x30] sm:$0xff]
    %v152 = vld [vmem:[#allocation2 + $0x38] sm:$0xff]
    %v153 = vld [vmem:[%s2] sm:$0x3]
    %v155 = vperm.slane %v153, 0
    %v156 = vperm.slane %v153, 1
    %v159 = vadd.f32 %v145, %v155
    %v160 = vadd.f32 %v146, %v156
    %v161 = vadd.f32 %v147, %v155
    %v162 = vadd.f32 %v148, %v156
    %v163 = vadd.f32 %v149, %v155
    %v164 = vadd.f32 %v150, %v156
    %v165 = vadd.f32 %v151, %v155
    %v166 = vadd.f32 %v152, %v156
    %167 = vst [vmem:[%s3] sm:$0xff] %v159
    %168 = vst.msk [vmem:[%s3 + $0x8] sm:$0xff] %vm55, %v160
    %169 = vst [vmem:[%s3 + $0x10] sm:$0xff] %v161
    %170 = vst.msk [vmem:[%s3 + $0x18] sm:$0xff] %vm55, %v162
    %171 = vst [vmem:[%s3 + $0x20] sm:$0xff] %v163
    %172 = vst.msk [vmem:[%s3 + $0x28] sm:$0xff] %vm55, %v164
    %173 = vst [vmem:[%s3 + $0x30] sm:$0xff] %v165
    %174 = vst.msk [vmem:[%s3 + $0x38] sm:$0xff] %vm55, %v166
  $region21: #{encoder_forward.15} parent=0 // pred_fallthru
    _
  // Predicated region
  $region22: #{encoder_forward.15} parent=0 // pred_check
    _
  $region23: #{encoder_forward.15} parent=0 // pred_check_branch
    %176 = sbr.rel (0) target = $region25
  $region24: #{encoder_forward.15} parent=0 // pred_region
    _
  $region25: #{encoder_forward.15} parent=0 // pred_fallthru
    _
  // Predicated region
  $region26: #{encoder_forward.15} parent=0 // pred_check
    _
  $region27: #{encoder_forward.15} parent=0 // pred_check_branch
    %178 = sbr.rel (0) target = $region29
  $region28: #{encoder_forward.15} parent=0 // pred_region
    _
  $region29: #{encoder_forward.15} parent=0 // pred_fallthru
    _

// kernel: encoder_forward.19
$region0: #{encoder_forward.19}
  #allocation0 [shape = 'u32[]', space=smem, size = 0x4, offset = 0x4, fixed_abs, tag = 'smem constant byte address 0x4 - core index']
  #allocation1 [shape = 'u32[72,128]{1,0:T(1,128)}', space=vmem, size = 0x9000, scoped, tag = 'internal scratch']
  #allocation2 [shape = 'f32[32,64]{1,0:T(8,128)}', space=vmem, size = 0x4000, scoped, tag = 'scratch operand']
  %s0 = inlined_call_operand.vmem [shape: f32[32,128], index: 0, kind: input, shape index: {}]
  %s1 = inlined_call_operand.vmem [shape: f32[128,64], index: 1, kind: input, shape index: {}]
  %s2 = inlined_call_operand.vmem [shape: f32[1,64], index: 2, kind: input, shape index: {}]
  %s3 = inlined_call_operand.vmem [shape: f32[32,64], index: 3, kind: input, shape index: {}]
  %s4 = inlined_call_operand.hbm [shape: f32[32,64], index: 4, kind: output, shape index: {}]
  %s5 = sld [smem:[#allocation0]]
  $region34: #{encoder_forward.19} parent=0
    _
  %s7 = ssub.s32 1, %s5
  %s8 = scalar_select 0, %s7, %s5
  $region1: #{encoder_forward.19} parent=0
    #allocation3 [shape = 'u8[16384]{0}', space=vmem, size = 0x4000, scoped, tag = 'output window, operand 0, single buffered']
    #allocation4 [shape = 's32[1]{0}', space=sflag, size = 0x4, scoped, tag = 'scoped memory for encoder_forward.19']
    %9 = vsyncpa [#allocation4], 0
    // Predicated region
    $region2: #{encoder_forward.19} parent=1 // pred_check
      _
    $region3: #{encoder_forward.19} parent=1 // pred_check_branch
      %11 = sbr.rel (0) target = $region5
    $region4: #{encoder_forward.19} parent=1 // pred_region
      _
    $region5: #{encoder_forward.19} parent=1 // pred_fallthru
      _
    // Predicated region
    $region6: #{encoder_forward.19} parent=1 // pred_check
      _
    $region7: #{encoder_forward.19} parent=1 // pred_check_branch
      %13 = sbr.rel (0) target = $region9
    $region8: #{encoder_forward.19} parent=1 // pred_region
      _
    $region9: #{encoder_forward.19} parent=1 // pred_fallthru
      _
    // Predicated region
    $region10: #{encoder_forward.19} parent=1 // pred_check
      _
    $region11: #{encoder_forward.19} parent=1 // pred_check_branch
      %15 = sbr.rel (0) target = $region13
    $region12: #{encoder_forward.19} parent=1 // pred_region
      _
    $region13: #{encoder_forward.19} parent=1 // pred_fallthru
      _
    // Predicated region
    $region14: #{encoder_forward.19} parent=1 // pred_check
      _
    $region15: #{encoder_forward.19} parent=1 // pred_check_branch
      %17 = sbr.rel (0) target = $region17
    $region16: #{encoder_forward.19} parent=1 // pred_region
      _
    $region17: #{encoder_forward.19} parent=1 // pred_fallthru
      _
    %p18 = scmp.eq.s32.totalorder 0, 0
    // Predicated region
    $region18: #{encoder_forward.19} parent=1 // pred_check
      %p19 = pneg %p18
    $region19: #{encoder_forward.19} parent=1 // pred_check_branch
      %21 = sbr.rel (%p19) target = $region21
    $region20: #{encoder_forward.19} parent=1 // pred_region
      %vm22 = vcmask 523264
      %23 = vst.msk [vmem:[#allocation2] sm:$0xff] %vm22, 0.0
      %24 = vst.msk [vmem:[#allocation2 + $0x8] sm:$0xff] %vm22, 0.0
      %25 = vst.msk [vmem:[#allocation2 + $0x10] sm:$0xff] %vm22, 0.0
      %26 = vst.msk [vmem:[#allocation2 + $0x18] sm:$0xff] %vm22, 0.0
    $region21: #{encoder_forward.19} parent=1 // pred_fallthru
      _
    %v27 = vld [vmem:[#allocation2] sm:$0xff]
    %v28 = vld [vmem:[#allocation2 + $0x8] sm:$0xff]
    %v29 = vld [vmem:[#allocation2 + $0x10] sm:$0xff]
    %v30 = vld [vmem:[#allocation2 + $0x18] sm:$0xff]
    %v31 = vld [vmem:[%s0] sm:$0xff]
    %v32 = vld [vmem:[%s0 + $0x8] sm:$0xff]
    %v33 = vld [vmem:[%s0 + $0x10] sm:$0xff]
    %v34 = vld [vmem:[%s0 + $0x18] sm:$0xff]
    %v35 = vld [vmem:[%s1] sm:$0xff]
    %v36 = vld [vmem:[%s1 + $0x8] sm:$0xff]
    %v37 = vld [vmem:[%s1 + $0x10] sm:$0xff]
    %v38 = vld [vmem:[%s1 + $0x18] sm:$0xff]
    %v39 = vld [vmem:[%s1 + $0x20] sm:$0xff]
    %v40 = vld [vmem:[%s1 + $0x28] sm:$0xff]
    %v41 = vld [vmem:[%s1 + $0x30] sm:$0xff]
    %v42 = vld [vmem:[%s1 + $0x38] sm:$0xff]
    %v43 = vld [vmem:[%s1 + $0x40] sm:$0xff]
    %v44 = vld [vmem:[%s1 + $0x48] sm:$0xff]
    %v45 = vld [vmem:[%s1 + $0x50] sm:$0xff]
    %v46 = vld [vmem:[%s1 + $0x58] sm:$0xff]
    %v47 = vld [vmem:[%s1 + $0x60] sm:$0xff]
    %v48 = vld [vmem:[%s1 + $0x68] sm:$0xff]
    %v49 = vld [vmem:[%s1 + $0x70] sm:$0xff]
    %v50 = vld [vmem:[%s1 + $0x78] sm:$0xff]
    %51 = vmatpush.msra.mxu0 %v50
    %52 = vmatpush.msra.mxu0 %v49
    %53 = vmatpush.msra.mxu0 %v48
    %54 = vmatpush.msra.mxu0 %v47
    %55 = vmatpush.msra.mxu0 %v46
    %56 = vmatpush.msra.mxu0 %v45
    %57 = vmatpush.msra.mxu0 %v44
    %58 = vmatpush.msra.mxu0 %v43
    %59 = vmatpush.msra.mxu0 %v42
    %60 = vmatpush.msra.mxu0 %v41
    %61 = vmatpush.msra.mxu0 %v40
    %62 = vmatpush.msra.mxu0 %v39
    %63 = vmatpush.msra.mxu0 %v38
    %64 = vmatpush.msra.mxu0 %v37
    %65 = vmatpush.msra.mxu0 %v36
    %66 = vmatpush.msra.mxu0 %v35
    %67 = vmatmul.f32.gmra.mxu0 %v31
    %v68 = vpop.f32.mrf.mxu0
    %v69 = vadd.f32 0.0, %v68
    %70 = vmatmul.f32.gmra.mxu0 %v32
    %v71 = vpop.f32.mrf.mxu0
    %v72 = vadd.f32 0.0, %v71
    %73 = vmatmul.f32.gmra.mxu0 %v33
    %v74 = vpop.f32.mrf.mxu0
    %v75 = vadd.f32 0.0, %v74
    %76 = vmatmul.f32.gmra.mxu0 %v34
    %v77 = vpop.f32.mrf.mxu0
    %v78 = vadd.f32 0.0, %v77
    %79 = vdwg.mxu0
    %v80 = vadd.f32 %v27, %v69
    %v81 = vadd.f32 %v28, %v72
    %v82 = vadd.f32 %v29, %v75
    %v83 = vadd.f32 %v30, %v78
    %vm84 = vcmask 523264
    %85 = vst.msk [vmem:[#allocation2] sm:$0xff] %vm84, %v80
    %86 = vst.msk [vmem:[#allocation2 + $0x8] sm:$0xff] %vm84, %v81
    %87 = vst.msk [vmem:[#allocation2 + $0x10] sm:$0xff] %vm84, %v82
    %88 = vst.msk [vmem:[#allocation2 + $0x18] sm:$0xff] %vm84, %v83
    // Predicated region
    $region22: #{encoder_forward.19} parent=1 // pred_check
      %p89 = pneg %p18
    $region23: #{encoder_forward.19} parent=1 // pred_check_branch
      %91 = sbr.rel (%p89) target = $region25
    $region24: #{encoder_forward.19} parent=1 // pred_region
      %v92 = vld [vmem:[#allocation2] sm:$0xff]
      %v93 = vld [vmem:[#allocation2 + $0x8] sm:$0xff]
      %v94 = vld [vmem:[#allocation2 + $0x10] sm:$0xff]
      %v95 = vld [vmem:[#allocation2 + $0x18] sm:$0xff]
      %v96 = vld [vmem:[%s2] sm:$0x1]
      %v98 = vperm.slane %v96, 0
      %v100 = vadd.f32 %v92, %v98
      %v101 = vadd.f32 %v93, %v98
      %v102 = vadd.f32 %v94, %v98
      %v103 = vadd.f32 %v95, %v98
      %v104 = vld [vmem:[%s3] sm:$0xff]
      %v105 = vld [vmem:[%s3 + $0x8] sm:$0xff]
      %v106 = vld [vmem:[%s3 + $0x10] sm:$0xff]
      %v107 = vld [vmem:[%s3 + $0x18] sm:$0xff]
      %v108 = vadd.f32 %v100, %v104
      %v109 = vadd.f32 %v101, %v105
      %v110 = vadd.f32 %v102, %v106
      %v111 = vadd.f32 %v103, %v107
      %v112 = vsel %vm84, %v108, 0.0
      %113 = vadd.xlane.f32.xlu0 %v112
      %v114 = vpop.xlane.xlu0 %113
      %v115 = vsel %vm84, %v109, 0.0
      %116 = vadd.xlane.f32.xlu0 %v115
      %v117 = vpop.xlane.xlu0 %116
      %v118 = vsel %vm84, %v110, 0.0
      %119 = vadd.xlane.f32.xlu0 %v118
      %v120 = vpop.xlane.xlu0 %119
      %v121 = vsel %vm84, %v111, 0.0
      %122 = vadd.xlane.f32.xlu0 %v121
      %v123 = vpop.xlane.xlu0 %122
      %v124 = vrcp.pop 64.0
      %v125 = vmul.f32 64.0, %v124
      %v126 = vsub.f32 1.0, %v125
      %v127 = vmul.f32 %v124, %v126
      %v128 = vadd.f32 %v124, %v127
      %vm129 = vweird.f32 %v124
      %v130 = vsel %vm129, %v124, %v128
      %v131 = vmul.f32 %v114, %v130
      %v132 = vmul.f32 %v117, %v130
      %v133 = vmul.f32 %v120, %v130
      %v134 = vmul.f32 %v123, %v130
      %v135 = vsub.f32 %v108, %v131
      %v136 = vsub.f32 %v109, %v132
      %v137 = vsub.f32 %v110, %v133
      %v138 = vsub.f32 %v111, %v134
      %v139 = vmul.f32 %v135, %v135
      %v140 = vmul.f32 %v136, %v136
      %v141 = vmul.f32 %v137, %v137
      %v142 = vmul.f32 %v138, %v138
      %v143 = vsel %vm84, %v139, 0.0
      %144 = vadd.xlane.f32.xlu0 %v143
      %v145 = vpop.xlane.xlu0 %144
      %v146 = vsel %vm84, %v140, 0.0
      %147 = vadd.xlane.f32.xlu0 %v146
      %v148 = vpop.xlane.xlu0 %147
      %v149 = vsel %vm84, %v141, 0.0
      %150 = vadd.xlane.f32.xlu0 %v149
      %v151 = vpop.xlane.xlu0 %150
      %v152 = vsel %vm84, %v142, 0.0
      %153 = vadd.xlane.f32.xlu0 %v152
      %v154 = vpop.xlane.xlu0 %153
      %v155 = vmul.f32 %v145, %v130
      %v156 = vmul.f32 %v148, %v130
      %v157 = vmul.f32 %v151, %v130
      %v158 = vmul.f32 %v154, %v130
      %v159 = vadd.f32 %v155, 1e-05
      %v160 = vadd.f32 %v156, 1e-05
      %v161 = vadd.f32 %v157, 1e-05
      %v162 = vadd.f32 %v158, 1e-05
      %v163 = vrsqrt.pop %v159
      %v164 = vmul.f32 %v163, %v159
      %v165 = vmul.f32 %v164, %v163
      %v166 = vmul.f32 0.5, %v165
      %v167 = vsub.f32 1.5, %v166
      %v168 = vmul.f32 %v163, %v167
      %vm169 = vweird.f32 %v159
      %vm170 = vweird.f32 %v163
      %vm171 = vmor %vm169, %vm170
      %v172 = vsel %vm171, %v163, %v168
      %v173 = vrsqrt.pop %v160
      %v174 = vmul.f32 %v173, %v160
      %v175 = vmul.f32 %v174, %v173
      %v176 = vmul.f32 0.5, %v175
      %v177 = vsub.f32 1.5, %v176
      %v178 = vmul.f32 %v173, %v177
      %vm179 = vweird.f32 %v160
      %vm180 = vweird.f32 %v173
      %vm181 = vmor %vm179, %vm180
      %v182 = vsel %vm181, %v173, %v178
      %v183 = vrsqrt.pop %v161
      %v184 = vmul.f32 %v183, %v161
      %v185 = vmul.f32 %v184, %v183
      %v186 = vmul.f32 0.5, %v185
      %v187 = vsub.f32 1.5, %v186
      %v188 = vmul.f32 %v183, %v187
      %vm189 = vweird.f32 %v161
      %vm190 = vweird.f32 %v183
      %vm191 = vmor %vm189, %vm190
      %v192 = vsel %vm191, %v183, %v188
      %v193 = vrsqrt.pop %v162
      %v194 = vmul.f32 %v193, %v162
      %v195 = vmul.f32 %v194, %v193
      %v196 = vmul.f32 0.5, %v195
      %v197 = vsub.f32 1.5, %v196
      %v198 = vmul.f32 %v193, %v197
      %vm199 = vweird.f32 %v162
      %vm200 = vweird.f32 %v193
      %vm201 = vmor %vm199, %vm200
      %v202 = vsel %vm201, %v193, %v198
      %v203 = vmul.f32 %v135, %v172
      %v204 = vmul.f32 %v136, %v182
      %v205 = vmul.f32 %v137, %v192
      %v206 = vmul.f32 %v138, %v202
      %207 = vst.msk [vmem:[#allocation3] sm:$0xff] %vm84, %v203
      %208 = vst.msk [vmem:[#allocation3 + $0x8] sm:$0xff] %vm84, %v204
      %209 = vst.msk [vmem:[#allocation3 + $0x10] sm:$0xff] %vm84, %v205
      %210 = vst.msk [vmem:[#allocation3 + $0x18] sm:$0xff] %vm84, %v206
    $region25: #{encoder_forward.19} parent=1 // pred_fallthru
      _
    // Predicated region
    $region26: #{encoder_forward.19} parent=1 // pred_check
      _
    $region27: #{encoder_forward.19} parent=1 // pred_check_branch
      %212 = sbr.rel (0) target = $region29
    $region28: #{encoder_forward.19} parent=1 // pred_region
      %214 = vsyncadd [#allocation4], 0
      %s215 = sshll.u32 [#allocation3], 4
      %s216 = int_to_ptr.vmem [resolvable:$true] %s215
      %s217 = sshll.u32 %s4, 4
      %s218 = int_to_ptr.hbm [resolvable:$true] %s217
      %223 = dma.vmem_to_hbm [thread:$0]  %s216, 512, %s218, [#allocation4], 128, 128, 8
    $region29: #{encoder_forward.19} parent=1 // pred_fallthru
      _
    // Predicated region
    $region30: #{encoder_forward.19} parent=1 // pred_check
      _
    $region31: #{encoder_forward.19} parent=1 // pred_check_branch
      %225 = sbr.rel (0) target = $region33
    $region32: #{encoder_forward.19} parent=1 // pred_region
      %227 = dma.done [#allocation4], 512
    $region33: #{encoder_forward.19} parent=1 // pred_fallthru
      _
    %228 = vsyncpa [#allocation4], 1

// kernel: encoder_forward.14
$region0: #{encoder_forward.14}
  #allocation0 [shape = 'u32[]', space=smem, size = 0x4, offset = 0x4, fixed_abs, tag = 'smem constant byte address 0x4 - core index']
  #allocation1 [shape = 'u32[72,128]{1,0:T(1,128)}', space=vmem, size = 0x9000, scoped, tag = 'internal scratch']
  #allocation2 [shape = 'f32[32,64]{1,0:T(8,128)}', space=vmem, size = 0x4000, scoped, tag = 'scratch operand']
  %s0 = inlined_call_operand.vmem [shape: f32[32,128], index: 0, kind: input, shape index: {}]
  %s1 = inlined_call_operand.vmem [shape: f32[128,64], index: 1, kind: input, shape index: {}]
  %s2 = inlined_call_operand.vmem [shape: f32[1,64], index: 2, kind: input, shape index: {}]
  %s3 = inlined_call_operand.vmem [shape: f32[32,64], index: 3, kind: input, shape index: {}]
  %s4 = inlined_call_operand.vmem [shape: f32[32,64], index: 4, kind: output, shape index: {}]
  %s5 = sld [smem:[#allocation0]]
  $region34: #{encoder_forward.14} parent=0
    _
  %s7 = ssub.s32 1, %s5
  %s8 = scalar_select 0, %s7, %s5
  // Predicated region
  $region2: #{encoder_forward.14} parent=0 // pred_check
    _
  $region3: #{encoder_forward.14} parent=0 // pred_check_branch
    %10 = sbr.rel (0) target = $region5
  $region4: #{encoder_forward.14} parent=0 // pred_region
    _
  $region5: #{encoder_forward.14} parent=0 // pred_fallthru
    _
  // Predicated region
  $region6: #{encoder_forward.14} parent=0 // pred_check
    _
  $region7: #{encoder_forward.14} parent=0 // pred_check_branch
    %12 = sbr.rel (0) target = $region9
  $region8: #{encoder_forward.14} parent=0 // pred_region
    _
  $region9: #{encoder_forward.14} parent=0 // pred_fallthru
    _
  // Predicated region
  $region10: #{encoder_forward.14} parent=0 // pred_check
    _
  $region11: #{encoder_forward.14} parent=0 // pred_check_branch
    %14 = sbr.rel (0) target = $region13
  $region12: #{encoder_forward.14} parent=0 // pred_region
    _
  $region13: #{encoder_forward.14} parent=0 // pred_fallthru
    _
  // Predicated region
  $region14: #{encoder_forward.14} parent=0 // pred_check
    _
  $region15: #{encoder_forward.14} parent=0 // pred_check_branch
    %16 = sbr.rel (0) target = $region17
  $region16: #{encoder_forward.14} parent=0 // pred_region
    _
  $region17: #{encoder_forward.14} parent=0 // pred_fallthru
    _
  %p17 = scmp.eq.s32.totalorder 0, 0
  // Predicated region
  $region18: #{encoder_forward.14} parent=0 // pred_check
    %p18 = pneg %p17
  $region19: #{encoder_forward.14} parent=0 // pred_check_branch
    %20 = sbr.rel (%p18) target = $region21
  $region20: #{encoder_forward.14} parent=0 // pred_region
    %vm21 = vcmask 523264
    %22 = vst.msk [vmem:[#allocation2] sm:$0xff] %vm21, 0.0
    %23 = vst.msk [vmem:[#allocation2 + $0x8] sm:$0xff] %vm21, 0.0
    %24 = vst.msk [vmem:[#allocation2 + $0x10] sm:$0xff] %vm21, 0.0
    %25 = vst.msk [vmem:[#allocation2 + $0x18] sm:$0xff] %vm21, 0.0
  $region21: #{encoder_forward.14} parent=0 // pred_fallthru
    _
  %v26 = vld [vmem:[#allocation2] sm:$0xff]
  %v27 = vld [vmem:[#allocation2 + $0x8] sm:$0xff]
  %v28 = vld [vmem:[#allocation2 + $0x10] sm:$0xff]
  %v29 = vld [vmem:[#allocation2 + $0x18] sm:$0xff]
  %v30 = vld [vmem:[%s0] sm:$0xff]
  %v31 = vld [vmem:[%s0 + $0x8] sm:$0xff]
  %v32 = vld [vmem:[%s0 + $0x10] sm:$0xff]
  %v33 = vld [vmem:[%s0 + $0x18] sm:$0xff]
  %v34 = vld [vmem:[%s1] sm:$0xff]
  %v35 = vld [vmem:[%s1 + $0x8] sm:$0xff]
  %v36 = vld [vmem:[%s1 + $0x10] sm:$0xff]
  %v37 = vld [vmem:[%s1 + $0x18] sm:$0xff]
  %v38 = vld [vmem:[%s1 + $0x20] sm:$0xff]
  %v39 = vld [vmem:[%s1 + $0x28] sm:$0xff]
  %v40 = vld [vmem:[%s1 + $0x30] sm:$0xff]
  %v41 = vld [vmem:[%s1 + $0x38] sm:$0xff]
  %v42 = vld [vmem:[%s1 + $0x40] sm:$0xff]
  %v43 = vld [vmem:[%s1 + $0x48] sm:$0xff]
  %v44 = vld [vmem:[%s1 + $0x50] sm:$0xff]
  %v45 = vld [vmem:[%s1 + $0x58] sm:$0xff]
  %v46 = vld [vmem:[%s1 + $0x60] sm:$0xff]
  %v47 = vld [vmem:[%s1 + $0x68] sm:$0xff]
  %v48 = vld [vmem:[%s1 + $0x70] sm:$0xff]
  %v49 = vld [vmem:[%s1 + $0x78] sm:$0xff]
  %50 = vmatpush.msra.mxu0 %v49
  %51 = vmatpush.msra.mxu0 %v48
  %52 = vmatpush.msra.mxu0 %v47
  %53 = vmatpush.msra.mxu0 %v46
  %54 = vmatpush.msra.mxu0 %v45
  %55 = vmatpush.msra.mxu0 %v44
  %56 = vmatpush.msra.mxu0 %v43
  %57 = vmatpush.msra.mxu0 %v42
  %58 = vmatpush.msra.mxu0 %v41
  %59 = vmatpush.msra.mxu0 %v40
  %60 = vmatpush.msra.mxu0 %v39
  %61 = vmatpush.msra.mxu0 %v38
  %62 = vmatpush.msra.mxu0 %v37
  %63 = vmatpush.msra.mxu0 %v36
  %64 = vmatpush.msra.mxu0 %v35
  %65 = vmatpush.msra.mxu0 %v34
  %66 = vmatmul.f32.gmra.mxu0 %v30
  %v67 = vpop.f32.mrf.mxu0
  %v68 = vadd.f32 0.0, %v67
  %69 = vmatmul.f32.gmra.mxu0 %v31
  %v70 = vpop.f32.mrf.mxu0
  %v71 = vadd.f32 0.0, %v70
  %72 = vmatmul.f32.gmra.mxu0 %v32
  %v73 = vpop.f32.mrf.mxu0
  %v74 = vadd.f32 0.0, %v73
  %75 = vmatmul.f32.gmra.mxu0 %v33
  %v76 = vpop.f32.mrf.mxu0
  %v77 = vadd.f32 0.0, %v76
  %78 = vdwg.mxu0
  %v79 = vadd.f32 %v26, %v68
  %v80 = vadd.f32 %v27, %v71
  %v81 = vadd.f32 %v28, %v74
  %v82 = vadd.f32 %v29, %v77
  %vm83 = vcmask 523264
  %84 = vst.msk [vmem:[#allocation2] sm:$0xff] %vm83, %v79
  %85 = vst.msk [vmem:[#allocation2 + $0x8] sm:$0xff] %vm83, %v80
  %86 = vst.msk [vmem:[#allocation2 + $0x10] sm:$0xff] %vm83, %v81
  %87 = vst.msk [vmem:[#allocation2 + $0x18] sm:$0xff] %vm83, %v82
  // Predicated region
  $region22: #{encoder_forward.14} parent=0 // pred_check
    %p88 = pneg %p17
  $region23: #{encoder_forward.14} parent=0 // pred_check_branch
    %90 = sbr.rel (%p88) target = $region25
  $region24: #{encoder_forward.14} parent=0 // pred_region
    %v91 = vld [vmem:[#allocation2] sm:$0xff]
    %v92 = vld [vmem:[#allocation2 + $0x8] sm:$0xff]
    %v93 = vld [vmem:[#allocation2 + $0x10] sm:$0xff]
    %v94 = vld [vmem:[#allocation2 + $0x18] sm:$0xff]
    %v95 = vld [vmem:[%s2] sm:$0x1]
    %v97 = vperm.slane %v95, 0
    %v99 = vadd.f32 %v91, %v97
    %v100 = vadd.f32 %v92, %v97
    %v101 = vadd.f32 %v93, %v97
    %v102 = vadd.f32 %v94, %v97
    %v103 = vld [vmem:[%s3] sm:$0xff]
    %v104 = vld [vmem:[%s3 + $0x8] sm:$0xff]
    %v105 = vld [vmem:[%s3 + $0x10] sm:$0xff]
    %v106 = vld [vmem:[%s3 + $0x18] sm:$0xff]
    %v107 = vadd.f32 %v99, %v103
    %v108 = vadd.f32 %v100, %v104
    %v109 = vadd.f32 %v101, %v105
    %v110 = vadd.f32 %v102, %v106
    %v111 = vsel %vm83, %v107, 0.0
    %112 = vadd.xlane.f32.xlu0 %v111
    %v113 = vpop.xlane.xlu0 %112
    %v114 = vsel %vm83, %v108, 0.0
    %115 = vadd.xlane.f32.xlu0 %v114
    %v116 = vpop.xlane.xlu0 %115
    %v117 = vsel %vm83, %v109, 0.0
    %118 = vadd.xlane.f32.xlu0 %v117
    %v119 = vpop.xlane.xlu0 %118
    %v120 = vsel %vm83, %v110, 0.0
    %121 = vadd.xlane.f32.xlu0 %v120
    %v122 = vpop.xlane.xlu0 %121
    %v123 = vrcp.pop 64.0
    %v124 = vmul.f32 64.0, %v123
    %v125 = vsub.f32 1.0, %v124
    %v126 = vmul.f32 %v123, %v125
    %v127 = vadd.f32 %v123, %v126
    %vm128 = vweird.f32 %v123
    %v129 = vsel %vm128, %v123, %v127
    %v130 = vmul.f32 %v113, %v129
    %v131 = vmul.f32 %v116, %v129
    %v132 = vmul.f32 %v119, %v129
    %v133 = vmul.f32 %v122, %v129
    %v134 = vsub.f32 %v107, %v130
    %v135 = vsub.f32 %v108, %v131
    %v136 = vsub.f32 %v109, %v132
    %v137 = vsub.f32 %v110, %v133
    %v138 = vmul.f32 %v134, %v134
    %v139 = vmul.f32 %v135, %v135
    %v140 = vmul.f32 %v136, %v136
    %v141 = vmul.f32 %v137, %v137
    %v142 = vsel %vm83, %v138, 0.0
    %143 = vadd.xlane.f32.xlu0 %v142
    %v144 = vpop.xlane.xlu0 %143
    %v145 = vsel %vm83, %v139, 0.0
    %146 = vadd.xlane.f32.xlu0 %v145
    %v147 = vpop.xlane.xlu0 %146
    %v148 = vsel %vm83, %v140, 0.0
    %149 = vadd.xlane.f32.xlu0 %v148
    %v150 = vpop.xlane.xlu0 %149
    %v151 = vsel %vm83, %v141, 0.0
    %152 = vadd.xlane.f32.xlu0 %v151
    %v153 = vpop.xlane.xlu0 %152
    %v154 = vmul.f32 %v144, %v129
    %v155 = vmul.f32 %v147, %v129
    %v156 = vmul.f32 %v150, %v129
    %v157 = vmul.f32 %v153, %v129
    %v158 = vadd.f32 %v154, 1e-05
    %v159 = vadd.f32 %v155, 1e-05
    %v160 = vadd.f32 %v156, 1e-05
    %v161 = vadd.f32 %v157, 1e-05
    %v162 = vrsqrt.pop %v158
    %v163 = vmul.f32 %v162, %v158
    %v164 = vmul.f32 %v163, %v162
    %v165 = vmul.f32 0.5, %v164
    %v166 = vsub.f32 1.5, %v165
    %v167 = vmul.f32 %v162, %v166
    %vm168 = vweird.f32 %v158
    %vm169 = vweird.f32 %v162
    %vm170 = vmor %vm168, %vm169
    %v171 = vsel %vm170, %v162, %v167
    %v172 = vrsqrt.pop %v159
    %v173 = vmul.f32 %v172, %v159
    %v174 = vmul.f32 %v173, %v172
    %v175 = vmul.f32 0.5, %v174
    %v176 = vsub.f32 1.5, %v175
    %v177 = vmul.f32 %v172, %v176
    %vm178 = vweird.f32 %v159
    %vm179 = vweird.f32 %v172
    %vm180 = vmor %vm178, %vm179
    %v181 = vsel %vm180, %v172, %v177
    %v182 = vrsqrt.pop %v160
    %v183 = vmul.f32 %v182, %v160
    %v184 = vmul.f32 %v183, %v182
    %v185 = vmul.f32 0.5, %v184
    %v186 = vsub.f32 1.5, %v185
    %v187 = vmul.f32 %v182, %v186
    %vm188 = vweird.f32 %v160
    %vm189 = vweird.f32 %v182
    %vm190 = vmor %vm188, %vm189
    %v191 = vsel %vm190, %v182, %v187
    %v192 = vrsqrt.pop %v161
    %v193 = vmul.f32 %v192, %v161
    %v194 = vmul.f32 %v193, %v192
    %v195 = vmul.f32 0.5, %v194
    %v196 = vsub.f32 1.5, %v195
    %v197 = vmul.f32 %v192, %v196
    %vm198 = vweird.f32 %v161
    %vm199 = vweird.f32 %v192
    %vm200 = vmor %vm198, %vm199
    %v201 = vsel %vm200, %v192, %v197
    %v202 = vmul.f32 %v134, %v171
    %v203 = vmul.f32 %v135, %v181
    %v204 = vmul.f32 %v136, %v191
    %v205 = vmul.f32 %v137, %v201
    %206 = vst.msk [vmem:[%s4] sm:$0xff] %vm83, %v202
    %207 = vst.msk [vmem:[%s4 + $0x8] sm:$0xff] %vm83, %v203
    %208 = vst.msk [vmem:[%s4 + $0x10] sm:$0xff] %vm83, %v204
    %209 = vst.msk [vmem:[%s4 + $0x18] sm:$0xff] %vm83, %v205
  $region25: #{encoder_forward.14} parent=0 // pred_fallthru
    _
  // Predicated region
  $region26: #{encoder_forward.14} parent=0 // pred_check
    _
  $region27: #{encoder_forward.14} parent=0 // pred_check_branch
    %211 = sbr.rel (0) target = $region29
  $region28: #{encoder_forward.14} parent=0 // pred_region
    _
  $region29: #{encoder_forward.14} parent=0 // pred_fallthru
    _
  // Predicated region
  $region30: #{encoder_forward.14} parent=0 // pred_check
    _
  $region31: #{encoder_forward.14} parent=0 // pred_check_branch
    %213 = sbr.rel (0) target = $region33
  $region32: #{encoder_forward.14} parent=0 // pred_region
    _
  $region33: #{encoder_forward.14} parent=0 // pred_fallthru
    _

</llo_original>
